<compile_context>
chip_gen: v5e
topology: v5e:2x2
jax: 0.10.0
libtpu: 0.0.40
codegen_flags: <defaults>
</compile_context>

<pallas_src>
import jax
import jax.numpy as jnp
import numpy as np
from jax.experimental import pallas as pl
from jax.experimental.pallas import tpu as pltpu

LANE = 128


def _round_up(x, m):
    return (x + m - 1) // m * m


# ---------------------------------------------------------------------------
# Fused Pallas kernel (one batch element per grid step)
# ---------------------------------------------------------------------------
def _bottleneck_fused_kernel(x_ref, w1_ref, b1_ref, w2_ref, b2_ref,
                             w3_ref, b3_ref, o_ref, pad_ref):
    _, h, w, cin = x_ref.shape
    p = w1_ref.shape[1]            # lane-padded hidden width (planes -> mult of 128)
    cout = w3_ref.shape[1]
    hw = h * w

    # residual / stage-1 input, kept in f32 in VMEM
    x2d = x_ref[...].astype(jnp.float32).reshape(hw, cin)        # (HW, Cin)

    # -- stage 1: 1x1 conv (BN scale folded into w1) + bias + ReLU ----------
    y1 = jnp.dot(x2d.astype(jnp.bfloat16), w1_ref[...],
                 preferred_element_type=jnp.float32)
    y1 = jnp.maximum(y1 + b1_ref[...], 0.0)                      # (HW, P)

    # stash into a zero-initialised padded scratch: the 3x3 halo stays in VMEM
    pad_ref[...] = jnp.zeros_like(pad_ref)
    pad_ref[pl.ds(1, h), pl.ds(1, w), :] = y1.reshape(h, w, p)

    # -- stage 2: 3x3 conv (pad=1, stride=1) as a single im2col matmul ------
    xp = pad_ref[...]                                            # (H+2, W+2, P)
    taps = [xp[dh:dh + h, dw:dw + w, :]
            for dh in range(3) for dw in range(3)]               # 9 x (H, W, P)
    patch = jnp.concatenate(taps, axis=-1).reshape(hw, 9 * p)    # (HW, 9P)
    y2 = jnp.dot(patch.astype(jnp.bfloat16), w2_ref[...],
                 preferred_element_type=jnp.float32)
    y2 = jnp.maximum(y2 + b2_ref[...], 0.0)                      # (HW, P)

    # -- stage 3: 1x1 conv + bias + residual add + ReLU ----------------------
    y3 = jnp.dot(y2.astype(jnp.bfloat16), w3_ref[...],
                 preferred_element_type=jnp.float32)
    y3 = y3 + b3_ref[...] + x2d                                  # (HW, Cout)
    o_ref[...] = jnp.maximum(y3, 0.0).reshape(1, h, w, cout).astype(o_ref.dtype)


# ---------------------------------------------------------------------------
# Wrappers
# ---------------------------------------------------------------------------
def bottleneck_forward_nhwc(x_nhwc, kp):
    n, h, w, cin = x_nhwc.shape
    p = kp["w1"].shape[1]
    cout = kp["w3"].shape[1]
    assert cin == cout, "stride=1, downsample=None => inplanes == planes*4"

    x_bf = x_nhwc.astype(jnp.bfloat16)

    return pl.pallas_call(
        _bottleneck_fused_kernel,
        out_shape=jax.ShapeDtypeStruct((n, h, w, cout), jnp.float32),
        grid_spec=pltpu.PrefetchScalarGridSpec(
            num_scalar_prefetch=0,
            grid=(n,),
            in_specs=[
                pl.BlockSpec((1, h, w, cin), lambda i: (i, 0, 0, 0)),  # x
                pl.BlockSpec((cin, p), lambda i: (0, 0)),              # w1 (folded)
                pl.BlockSpec((1, p), lambda i: (0, 0)),                # b1
                pl.BlockSpec((9 * p, p), lambda i: (0, 0)),            # w2 (im2col)
                pl.BlockSpec((1, p), lambda i: (0, 0)),                # b2
                pl.BlockSpec((p, cout), lambda i: (0, 0)),             # w3 (folded)
                pl.BlockSpec((1, cout), lambda i: (0, 0)),             # b3
            ],
            out_specs=pl.BlockSpec((1, h, w, cout), lambda i: (i, 0, 0, 0)),
            scratch_shapes=[pltpu.VMEM((h + 2, w + 2, p), jnp.float32)],
        ),
        compiler_params=pltpu.CompilerParams(
            dimension_semantics=("parallel",)),
    )(x_bf, kp["w1"], kp["b1"], kp["w2"], kp["b2"], kp["w3"], kp["b3"])


def bottleneck_forward_nchw(x_nchw, kp):
    x_nhwc = jnp.transpose(x_nchw, (0, 2, 3, 1))
    y = bottleneck_forward_nhwc(x_nhwc, kp)
    return jnp.transpose(y, (0, 3, 1, 2))


# ---------------------------------------------------------------------------
# Parameter construction (deterministic) + pure-JAX references for checking
# ---------------------------------------------------------------------------
def _fold_bn(gamma, beta, mean, var, eps=1e-5):
    s = gamma / jnp.sqrt(var + eps)
    b = beta - mean * s
    return s.astype(jnp.float32), b.astype(jnp.float32)


def make_params(key, inplanes, planes, expansion=4):
    cout = planes * expansion
    ks = jax.random.split(key, 16)
    f = jnp.float32

    def bn_params(k0, k1, k2, k3, c):
        gamma = 1.0 + 0.1 * jax.random.normal(k0, (c,), f)
        beta = 0.1 * jax.random.normal(k1, (c,), f)
        mean = 0.1 * jax.random.normal(k2, (c,), f)
        var = 0.5 + 0.5 * jnp.abs(jax.random.normal(k3, (c,), f))
        return gamma, beta, mean, var

    # conv weights in HWIO layout
    w1 = 0.2 * jax.random.normal(ks[0], (1, 1, inplanes, planes), f)
    w2 = 0.2 * jax.random.normal(ks[1], (3, 3, planes, planes), f)
    w3 = 0.2 * jax.random.normal(ks[2], (1, 1, planes, cout), f)
    bn1 = bn_params(ks[3], ks[4], ks[5], ks[6], planes)
    bn2 = bn_params(ks[7], ks[8], ks[9], ks[10], planes)
    bn3 = bn_params(ks[11], ks[12], ks[13], ks[14], cout)

    s1, b1 = _fold_bn(*bn1)
    s2, b2 = _fold_bn(*bn2)
    s3, b3 = _fold_bn(*bn3)

    # Fold BN scale into conv weights (host-side, one-time).
    w1f = w1[0, 0] * s1[None, :]            # (Cin, planes)
    w2f = w2 * s2[None, None, None, :]      # (3, 3, planes, planes)
    w3f = w3[0, 0] * s3[None, :]            # (planes, Cout)

    # Lane-pad hidden channel dims to a multiple of 128 (zeros => same math).
    p = _round_up(planes, LANE)
    w1p = jnp.zeros((inplanes, p), f).at[:, :planes].set(w1f)
    b1p = jnp.zeros((1, p), f).at[:, :planes].set(b1[None, :])
    w2p = jnp.zeros((9, p, p), f).at[:, :planes, :planes].set(
        w2f.reshape(9, planes, planes)).reshape(9 * p, p)
    b2p = jnp.zeros((1, p), f).at[:, :planes].set(b2[None, :])
    w3p = jnp.zeros((p, cout), f).at[:planes, :].set(w3f)

    kernel_params = {
        "w1": w1p.astype(jnp.bfloat16), "b1": b1p,
        "w2": w2p.astype(jnp.bfloat16), "b2": b2p,
        "w3": w3p.astype(jnp.bfloat16), "b3": b3[None, :],
    }
    ref_params = {
        "w1": w1, "w2": w2, "w3": w3,
        "bn1": bn1, "bn2": bn2, "bn3": bn3,
        # bf16-matched folded weights for the tight reference check
        "w1f": w1f[None, None].astype(jnp.bfloat16),
        "w2f": w2f.astype(jnp.bfloat16),
        "w3f": w3f[None, None].astype(jnp.bfloat16),
        "b1": b1[None, :], "b2": b2[None, :], "b3": b3[None, :],
    }
    return kernel_params, ref_params


def _conv(x, w, pad):
    return jax.lax.conv_general_dilated(
        x, w, (1, 1), [(pad, pad), (pad, pad)],
        dimension_numbers=("NHWC", "HWIO", "NHWC"),
        preferred_element_type=jnp.float32)


def reference_matched_nhwc(x, rp):
    """Pure-JAX reference mirroring the kernel's bf16/f32 mixed precision."""
    x_bf = x.astype(jnp.bfloat16)
    o1 = jnp.maximum(_conv(x_bf, rp["w1f"], 0) + rp["b1"], 0.0).astype(jnp.bfloat16)
    o2 = jnp.maximum(_conv(o1, rp["w2f"], 1) + rp["b2"], 0.0).astype(jnp.bfloat16)
    o3 = _conv(o2, rp["w3f"], 0) + rp["b3"] + x_bf.astype(jnp.float32)
    return jnp.maximum(o3, 0.0)


def reference_f32_nhwc(x, rp, eps=1e-5):
    """Full-f32 reference of the original module semantics (inference BN)."""
    def bn(v, pbn):
        g, b, m, var = pbn
        return g * (v - m) / jnp.sqrt(var + eps) + b

    o = jax.nn.relu(bn(_conv(x, rp["w1"], 0), rp["bn1"]))
    o = jax.nn.relu(bn(_conv(o, rp["w2"], 1), rp["bn2"]))
    o = bn(_conv(o, rp["w3"], 0), rp["bn3"])
    return jax.nn.relu(o + x)


# ---------------------------------------------------------------------------
if __name__ == "__main__":
    key = jax.random.PRNGKey(0)
    k_x, k_p = jax.random.split(key)

    # Bottleneck(inplanes=16, planes=4, stride=1, downsample=None)
    N, inplanes, H, W = 2, 16, 16, 16
    planes = 4

    x_nchw = jax.random.normal(k_x, (N, inplanes, H, W), jnp.float32)
    kernel_params, ref_params = make_params(k_p, inplanes, planes)

    fwd = jax.jit(bottleneck_forward_nchw)
    out = jax.block_until_ready(fwd(x_nchw, kernel_params))

    x_nhwc = jnp.transpose(x_nchw, (0, 2, 3, 1))

    # tight check vs. a reference using the exact same bf16/f32 math
    ref_m = jnp.transpose(reference_matched_nhwc(x_nhwc, ref_params), (0, 3, 1, 2))
    np.testing.assert_allclose(np.asarray(out), np.asarray(ref_m),
                               rtol=2e-3, atol=2e-3)

    # loose check vs. the full-f32 original-module semantics
    ref_f = jnp.transpose(reference_f32_nhwc(x_nhwc, ref_params), (0, 3, 1, 2))
    np.testing.assert_allclose(np.asarray(out), np.asarray(ref_f),
                               rtol=1e-1, atol=1e-1)

    print("KERNEL_OK")
</pallas_src>

<mosaic_0001>
module attributes {stable_mosaic.version = 11 : i64} {
  func.func @_bottleneck_fused_kernel(%arg0: i32, %arg1: memref<1x16x16x16xbf16, #tpu.memory_space<vmem>>, %arg2: memref<16x128xbf16, #tpu.memory_space<vmem>>, %arg3: memref<1x128xf32, #tpu.memory_space<vmem>>, %arg4: memref<1152x128xbf16, #tpu.memory_space<vmem>>, %arg5: memref<1x128xf32, #tpu.memory_space<vmem>>, %arg6: memref<128x16xbf16, #tpu.memory_space<vmem>>, %arg7: memref<1x16xf32, #tpu.memory_space<vmem>>, %arg8: memref<1x16x16x16xf32, #tpu.memory_space<vmem>>, %arg9: memref<18x18x128xf32, #tpu.memory_space<vmem>>) attributes {dimension_semantics = [#tpu.dimension_semantics<parallel>], iteration_bounds = array<i64: 2>, scalar_prefetch = 0 : i64, scratch_operands = 1 : i64, tpu.core_type = #tpu.core_type<tc>, window_params = [{transform_indices = @transform_0, window_bounds = array<i64: 1, 16, 16, 16>}, {pipeline_mode = #tpu.pipeline_mode<synchronous>, transform_indices = @transform_1, window_bounds = array<i64: 16, 128>}, {pipeline_mode = #tpu.pipeline_mode<synchronous>, transform_indices = @transform_2, window_bounds = array<i64: 1, 128>}, {pipeline_mode = #tpu.pipeline_mode<synchronous>, transform_indices = @transform_3, window_bounds = array<i64: 1152, 128>}, {pipeline_mode = #tpu.pipeline_mode<synchronous>, transform_indices = @transform_4, window_bounds = array<i64: 1, 128>}, {pipeline_mode = #tpu.pipeline_mode<synchronous>, transform_indices = @transform_5, window_bounds = array<i64: 128, 16>}, {pipeline_mode = #tpu.pipeline_mode<synchronous>, transform_indices = @transform_6, window_bounds = array<i64: 1, 16>}, {transform_indices = @transform_7, window_bounds = array<i64: 1, 16, 16, 16>}]} {
    %c0 = arith.constant 0 : index
    %c0_0 = arith.constant 0 : index
    %c0_1 = arith.constant 0 : index
    %c0_2 = arith.constant 0 : index
    %0 = vector.load %arg1[%c0, %c0_0, %c0_1, %c0_2] : memref<1x16x16x16xbf16, #tpu.memory_space<vmem>>, vector<1x16x16x16xbf16>
    %1 = arith.extf %0 : vector<1x16x16x16xbf16> to vector<1x16x16x16xf32>
    %2 = vector.shape_cast %1 : vector<1x16x16x16xf32> to vector<256x16xf32>
    %3 = arith.truncf %2 : vector<256x16xf32> to vector<256x16xbf16>
    %c0_3 = arith.constant 0 : index
    %c0_4 = arith.constant 0 : index
    %4 = vector.load %arg2[%c0_3, %c0_4] : memref<16x128xbf16, #tpu.memory_space<vmem>>, vector<16x128xbf16>
    %cst = arith.constant dense<0.000000e+00> : vector<256x128xf32>
    %5 = tpu.matmul %3, %4, %cst {dimension_numbers = #tpu.dot_dimension_numbers<[1], [0], [0], [1], [0, 0, 1, 1], [], []>} : vector<256x16xbf16>, vector<16x128xbf16>, vector<256x128xf32> -> vector<256x128xf32>
    %c0_5 = arith.constant 0 : index
    %c0_6 = arith.constant 0 : index
    %6 = vector.load %arg3[%c0_5, %c0_6] : memref<1x128xf32, #tpu.memory_space<vmem>>, vector<1x128xf32>
    %7 = vector.broadcast %6 : vector<1x128xf32> to vector<256x128xf32>
    %8 = arith.addf %5, %7 : vector<256x128xf32>
    %cst_7 = arith.constant 0.000000e+00 : f32
    %9 = vector.broadcast %cst_7 : f32 to vector<256x128xf32>
    %10 = arith.maximumf %8, %9 : vector<256x128xf32>
    %cst_8 = arith.constant 0.000000e+00 : f32
    %11 = vector.broadcast %cst_8 : f32 to vector<18x18x128xf32>
    %c0_9 = arith.constant 0 : index
    %c0_10 = arith.constant 0 : index
    %c0_11 = arith.constant 0 : index
    %12 = vector.load %arg9[%c0_9, %c0_10, %c0_11] : memref<18x18x128xf32, #tpu.memory_space<vmem>>, vector<18x18x128xf32>
    tpu.vector_store %arg9[%c0_9, %c0_10, %c0_11], %11 {strides = array<i32>} : memref<18x18x128xf32, #tpu.memory_space<vmem>>, vector<18x18x128xf32>,
    %13 = vector.shape_cast %10 : vector<256x128xf32> to vector<16x16x128xf32>
    %c1 = arith.constant 1 : index
    %c1_12 = arith.constant 1 : index
    %c0_13 = arith.constant 0 : index
    %14 = vector.load %arg9[%c1, %c1_12, %c0_13] : memref<18x18x128xf32, #tpu.memory_space<vmem>>, vector<16x16x128xf32>
    tpu.vector_store %arg9[%c1, %c1_12, %c0_13], %13 {strides = array<i32>} : memref<18x18x128xf32, #tpu.memory_space<vmem>>, vector<16x16x128xf32>,
    %c0_14 = arith.constant 0 : index
    %c0_15 = arith.constant 0 : index
    %c0_16 = arith.constant 0 : index
    %15 = vector.load %arg9[%c0_14, %c0_15, %c0_16] : memref<18x18x128xf32, #tpu.memory_space<vmem>>, vector<18x18x128xf32>
    %16 = vector.extract_strided_slice %15 {offsets = [0, 0, 0], sizes = [16, 16, 128], strides = [1, 1, 1]} : vector<18x18x128xf32> to vector<16x16x128xf32>
    %17 = vector.extract_strided_slice %15 {offsets = [0, 1, 0], sizes = [16, 16, 128], strides = [1, 1, 1]} : vector<18x18x128xf32> to vector<16x16x128xf32>
    %18 = vector.extract_strided_slice %15 {offsets = [0, 2, 0], sizes = [16, 16, 128], strides = [1, 1, 1]} : vector<18x18x128xf32> to vector<16x16x128xf32>
    %19 = vector.extract_strided_slice %15 {offsets = [1, 0, 0], sizes = [16, 16, 128], strides = [1, 1, 1]} : vector<18x18x128xf32> to vector<16x16x128xf32>
    %20 = vector.extract_strided_slice %15 {offsets = [1, 1, 0], sizes = [16, 16, 128], strides = [1, 1, 1]} : vector<18x18x128xf32> to vector<16x16x128xf32>
    %21 = vector.extract_strided_slice %15 {offsets = [1, 2, 0], sizes = [16, 16, 128], strides = [1, 1, 1]} : vector<18x18x128xf32> to vector<16x16x128xf32>
    %22 = vector.extract_strided_slice %15 {offsets = [2, 0, 0], sizes = [16, 16, 128], strides = [1, 1, 1]} : vector<18x18x128xf32> to vector<16x16x128xf32>
    %23 = vector.extract_strided_slice %15 {offsets = [2, 1, 0], sizes = [16, 16, 128], strides = [1, 1, 1]} : vector<18x18x128xf32> to vector<16x16x128xf32>
    %24 = vector.extract_strided_slice %15 {offsets = [2, 2, 0], sizes = [16, 16, 128], strides = [1, 1, 1]} : vector<18x18x128xf32> to vector<16x16x128xf32>
    %25 = tpu.concatenate %16, %17, %18, %19, %20, %21, %22, %23, %24 in 2 : vector<16x16x128xf32>, vector<16x16x128xf32>, vector<16x16x128xf32>, vector<16x16x128xf32>, vector<16x16x128xf32>, vector<16x16x128xf32>, vector<16x16x128xf32>, vector<16x16x128xf32>, vector<16x16x128xf32> -> vector<16x16x1152xf32>
    %26 = vector.shape_cast %25 : vector<16x16x1152xf32> to vector<256x1152xf32>
    %27 = arith.truncf %26 : vector<256x1152xf32> to vector<256x1152xbf16>
    %c0_17 = arith.constant 0 : index
    %c0_18 = arith.constant 0 : index
    %28 = vector.load %arg4[%c0_17, %c0_18] : memref<1152x128xbf16, #tpu.memory_space<vmem>>, vector<1152x128xbf16>
    %cst_19 = arith.constant dense<0.000000e+00> : vector<256x128xf32>
    %29 = tpu.matmul %27, %28, %cst_19 {dimension_numbers = #tpu.dot_dimension_numbers<[1], [0], [0], [1], [0, 0, 1, 1], [], []>} : vector<256x1152xbf16>, vector<1152x128xbf16>, vector<256x128xf32> -> vector<256x128xf32>
    %c0_20 = arith.constant 0 : index
    %c0_21 = arith.constant 0 : index
    %30 = vector.load %arg5[%c0_20, %c0_21] : memref<1x128xf32, #tpu.memory_space<vmem>>, vector<1x128xf32>
    %31 = vector.broadcast %30 : vector<1x128xf32> to vector<256x128xf32>
    %32 = arith.addf %29, %31 : vector<256x128xf32>
    %cst_22 = arith.constant 0.000000e+00 : f32
    %33 = vector.broadcast %cst_22 : f32 to vector<256x128xf32>
    %34 = arith.maximumf %32, %33 : vector<256x128xf32>
    %35 = arith.truncf %34 : vector<256x128xf32> to vector<256x128xbf16>
    %c0_23 = arith.constant 0 : index
    %c0_24 = arith.constant 0 : index
    %36 = vector.load %arg6[%c0_23, %c0_24] : memref<128x16xbf16, #tpu.memory_space<vmem>>, vector<128x16xbf16>
    %cst_25 = arith.constant dense<0.000000e+00> : vector<256x16xf32>
    %37 = tpu.matmul %35, %36, %cst_25 {dimension_numbers = #tpu.dot_dimension_numbers<[1], [0], [0], [1], [0, 0, 1, 1], [], []>} : vector<256x128xbf16>, vector<128x16xbf16>, vector<256x16xf32> -> vector<256x16xf32>
    %c0_26 = arith.constant 0 : index
    %c0_27 = arith.constant 0 : index
    %38 = vector.load %arg7[%c0_26, %c0_27] : memref<1x16xf32, #tpu.memory_space<vmem>>, vector<1x16xf32>
    %39 = vector.broadcast %38 : vector<1x16xf32> to vector<256x16xf32>
    %40 = arith.addf %37, %39 : vector<256x16xf32>
    %41 = arith.addf %40, %2 : vector<256x16xf32>
    %cst_28 = arith.constant 0.000000e+00 : f32
    %42 = vector.broadcast %cst_28 : f32 to vector<256x16xf32>
    %43 = arith.maximumf %41, %42 : vector<256x16xf32>
    %44 = vector.shape_cast %43 : vector<256x16xf32> to vector<1x16x16x16xf32>
    %c0_29 = arith.constant 0 : index
    %c0_30 = arith.constant 0 : index
    %c0_31 = arith.constant 0 : index
    %c0_32 = arith.constant 0 : index
    %45 = vector.load %arg8[%c0_29, %c0_30, %c0_31, %c0_32] : memref<1x16x16x16xf32, #tpu.memory_space<vmem>>, vector<1x16x16x16xf32>
    tpu.vector_store %arg8[%c0_29, %c0_30, %c0_31, %c0_32], %44 {strides = array<i32>} : memref<1x16x16x16xf32, #tpu.memory_space<vmem>>, vector<1x16x16x16xf32>,
    return
  }
  func.func @transform_0(%arg0: i32) -> (i32, i32, i32, i32) {
    %c0_i32 = arith.constant 0 : i32
    %c0_i32_0 = arith.constant 0 : i32
    %c0_i32_1 = arith.constant 0 : i32
    %c0_i32_2 = arith.constant 0 : i32
    return %arg0, %c0_i32, %c0_i32_0, %c0_i32_1 : i32, i32, i32, i32
  }
  func.func @transform_1(%arg0: i32) -> (i32, i32) {
    %c0_i32 = arith.constant 0 : i32
    %c0_i32_0 = arith.constant 0 : i32
    %c0_i32_1 = arith.constant 0 : i32
    return %c0_i32, %c0_i32_0 : i32, i32
  }
  func.func @transform_2(%arg0: i32) -> (i32, i32) {
    %c0_i32 = arith.constant 0 : i32
    %c0_i32_0 = arith.constant 0 : i32
    %c0_i32_1 = arith.constant 0 : i32
    return %c0_i32, %c0_i32_0 : i32, i32
  }
  func.func @transform_3(%arg0: i32) -> (i32, i32) {
    %c0_i32 = arith.constant 0 : i32
    %c0_i32_0 = arith.constant 0 : i32
    %c0_i32_1 = arith.constant 0 : i32
    return %c0_i32, %c0_i32_0 : i32, i32
  }
  func.func @transform_4(%arg0: i32) -> (i32, i32) {
    %c0_i32 = arith.constant 0 : i32
    %c0_i32_0 = arith.constant 0 : i32
    %c0_i32_1 = arith.constant 0 : i32
    return %c0_i32, %c0_i32_0 : i32, i32
  }
  func.func @transform_5(%arg0: i32) -> (i32, i32) {
    %c0_i32 = arith.constant 0 : i32
    %c0_i32_0 = arith.constant 0 : i32
    %c0_i32_1 = arith.constant 0 : i32
    return %c0_i32, %c0_i32_0 : i32, i32
  }
  func.func @transform_6(%arg0: i32) -> (i32, i32) {
    %c0_i32 = arith.constant 0 : i32
    %c0_i32_0 = arith.constant 0 : i32
    %c0_i32_1 = arith.constant 0 : i32
    return %c0_i32, %c0_i32_0 : i32, i32
  }
  func.func @transform_7(%arg0: i32) -> (i32, i32, i32, i32) {
    %c0_i32 = arith.constant 0 : i32
    %c0_i32_0 = arith.constant 0 : i32
    %c0_i32_1 = arith.constant 0 : i32
    %c0_i32_2 = arith.constant 0 : i32
    return %arg0, %c0_i32, %c0_i32_0, %c0_i32_1 : i32, i32, i32, i32
  }
}

</mosaic_0001>

<llo_original>
// kernel: bottleneck_forward_nchw.1
$region0: #{bottleneck_forward_nchw.1}
  #allocation0 [shape = 'u32[]', space=smem, size = 0x4, offset = 0x4, fixed_abs, tag = 'smem constant byte address 0x4 - core index']
  #allocation1 [shape = 'u32[72,128]{1,0:T(1,128)}', space=vmem, size = 0x9000, scoped, tag = 'internal scratch']
  #allocation2 [shape = 'f32[18,18,128]{2,1,0:T(8,128)}', space=vmem, size = 0x36000, scoped, tag = 'scratch operand']
  %s0 = inlined_call_operand.vmem [shape: bf16[2,16,16,16], index: 0, kind: input, shape index: {}]
  %s1 = inlined_call_operand.vmem [shape: bf16[16,128], index: 1, kind: input, shape index: {}]
  %s2 = inlined_call_operand.vmem [shape: f32[1,128], index: 2, kind: input, shape index: {}]
  %s3 = inlined_call_operand.vmem [shape: bf16[1152,128], index: 3, kind: input, shape index: {}]
  %s4 = inlined_call_operand.vmem [shape: f32[1,128], index: 4, kind: input, shape index: {}]
  %s5 = inlined_call_operand.vmem [shape: bf16[128,16], index: 5, kind: input, shape index: {}]
  %s6 = inlined_call_operand.vmem [shape: f32[1,16], index: 6, kind: input, shape index: {}]
  %s7 = inlined_call_operand.vmem [shape: f32[2,16,16,16], index: 7, kind: output, shape index: {}]
  %s8 = sld [smem:[#allocation0]]
  $region61: #{bottleneck_forward_nchw.1} parent=0
    _
  %s10 = ssub.s32 1, %s8
  %s11 = scalar_select 0, %s10, %s8
  loop: start=0, step=1, limit=4
  $region2: #{bottleneck_forward_nchw.1} parent=0 // loop_pre_header
    _
  $region3: #{bottleneck_forward_nchw.1} parent=0 // loop_header
    %s13 = sphi 0, %s17
    %p14 = scmp.ge.s32.totalorder %s13, 4
    %s23 = sphi 0, %s25
    %s26 = sphi 0, %s23
    %s27 = sphi 0, %s26
    %s43 = sphi 0, %s27
    %s47 = sphi 0, %s47
    %s49 = sphi 0, %s47
    %s50 = sphi 0, %s49
    %s64 = sphi 0, %s50
    %s68 = sphi 0, %s68
    %s70 = sphi 0, %s68
    %s71 = sphi 0, %s70
    %s85 = sphi 0, %s71
    %s89 = sphi 0, %s89
    %s91 = sphi 0, %s89
    %s92 = sphi 0, %s91
    %s106 = sphi 0, %s92
    %s110 = sphi 0, %s110
    %s112 = sphi 0, %s110
    %s113 = sphi 0, %s112
    %s127 = sphi 0, %s113
    %s131 = sphi 0, %s131
    %s133 = sphi 0, %s131
    %s134 = sphi 0, %s133
    %s148 = sphi 0, %s134
    %s152 = sphi 0, %s152
    %s154 = sphi 0, %s152
    %s155 = sphi 0, %s154
    %s169 = sphi 0, %s155
    %s175 = sphi 0, %s177
    %s178 = sphi 0, %s175
    %s179 = sphi 0, %s178
    %s195 = sphi 0, %s179
  $region4: #{bottleneck_forward_nchw.1} parent=0 // loop_header_branch
    %16 = sbr.rel (%p14) target = $region8
  $region5: #{bottleneck_forward_nchw.1} parent=0 // loop_body
    %s18 = ssub.s32 %s13, 1
    %s19 = ssub.s32 %s13, 2
    %s20 = sadd.s32 %s13, 1
    %s21 = ssub.s32 %s13, %s20
    %p22 = scmp.eq.s32.totalorder %s21, 0
    %s24 = sadd.s32 %s23, 1
    %s25 = scalar_select %p22, %s23, %s24
    %p28 = pneg %p22
    %p29 = scmp.eq.s32.totalorder %s13, 1
    %p30 = por %p28, %p29
    %p31 = scmp.ne.s32.totalorder %s23, %s26
    %p32 = scmp.eq.s32.totalorder %s13, 0
    %p33 = por %p31, %p32
    %p34 = scmp.ne.s32.totalorder %s23, %s26
    %p35 = scmp.eq.s32.totalorder %s18, 1
    %p36 = por %p34, %p35
    %p37 = scmp.ne.s32.totalorder %s26, %s27
    %p38 = scmp.eq.s32.totalorder %s18, 0
    %p39 = por %p37, %p38
    %p40 = scmp.ne.s32.totalorder %s26, %s27
    %p41 = scmp.eq.s32.totalorder %s19, 1
    %p42 = por %p40, %p41
    %p44 = scmp.ne.s32.totalorder %s27, %s43
    %p45 = scmp.eq.s32.totalorder %s19, 0
    %p46 = por %p44, %p45
    %s48 = sadd.s32 %s47, 1
    %p51 = scmp.eq.s32.totalorder %s13, 1
    %p52 = scmp.ne.s32.totalorder %s47, %s49
    %p53 = scmp.eq.s32.totalorder %s13, 0
    %p54 = por %p52, %p53
    %p55 = scmp.ne.s32.totalorder %s47, %s49
    %p56 = scmp.eq.s32.totalorder %s18, 1
    %p57 = por %p55, %p56
    %p58 = scmp.ne.s32.totalorder %s49, %s50
    %p59 = scmp.eq.s32.totalorder %s18, 0
    %p60 = por %p58, %p59
    %p61 = scmp.ne.s32.totalorder %s49, %s50
    %p62 = scmp.eq.s32.totalorder %s19, 1
    %p63 = por %p61, %p62
    %p65 = scmp.ne.s32.totalorder %s50, %s64
    %p66 = scmp.eq.s32.totalorder %s19, 0
    %p67 = por %p65, %p66
    %s69 = sadd.s32 %s68, 1
    %p72 = scmp.eq.s32.totalorder %s13, 1
    %p73 = scmp.ne.s32.totalorder %s68, %s70
    %p74 = scmp.eq.s32.totalorder %s13, 0
    %p75 = por %p73, %p74
    %p76 = scmp.ne.s32.totalorder %s68, %s70
    %p77 = scmp.eq.s32.totalorder %s18, 1
    %p78 = por %p76, %p77
    %p79 = scmp.ne.s32.totalorder %s70, %s71
    %p80 = scmp.eq.s32.totalorder %s18, 0
    %p81 = por %p79, %p80
    %p82 = scmp.ne.s32.totalorder %s70, %s71
    %p83 = scmp.eq.s32.totalorder %s19, 1
    %p84 = por %p82, %p83
    %p86 = scmp.ne.s32.totalorder %s71, %s85
    %p87 = scmp.eq.s32.totalorder %s19, 0
    %p88 = por %p86, %p87
    %s90 = sadd.s32 %s89, 1
    %p93 = scmp.eq.s32.totalorder %s13, 1
    %p94 = scmp.ne.s32.totalorder %s89, %s91
    %p95 = scmp.eq.s32.totalorder %s13, 0
    %p96 = por %p94, %p95
    %p97 = scmp.ne.s32.totalorder %s89, %s91
    %p98 = scmp.eq.s32.totalorder %s18, 1
    %p99 = por %p97, %p98
    %p100 = scmp.ne.s32.totalorder %s91, %s92
    %p101 = scmp.eq.s32.totalorder %s18, 0
    %p102 = por %p100, %p101
    %p103 = scmp.ne.s32.totalorder %s91, %s92
    %p104 = scmp.eq.s32.totalorder %s19, 1
    %p105 = por %p103, %p104
    %p107 = scmp.ne.s32.totalorder %s92, %s106
    %p108 = scmp.eq.s32.totalorder %s19, 0
    %p109 = por %p107, %p108
    %s111 = sadd.s32 %s110, 1
    %p114 = scmp.eq.s32.totalorder %s13, 1
    %p115 = scmp.ne.s32.totalorder %s110, %s112
    %p116 = scmp.eq.s32.totalorder %s13, 0
    %p117 = por %p115, %p116
    %p118 = scmp.ne.s32.totalorder %s110, %s112
    %p119 = scmp.eq.s32.totalorder %s18, 1
    %p120 = por %p118, %p119
    %p121 = scmp.ne.s32.totalorder %s112, %s113
    %p122 = scmp.eq.s32.totalorder %s18, 0
    %p123 = por %p121, %p122
    %p124 = scmp.ne.s32.totalorder %s112, %s113
    %p125 = scmp.eq.s32.totalorder %s19, 1
    %p126 = por %p124, %p125
    %p128 = scmp.ne.s32.totalorder %s113, %s127
    %p129 = scmp.eq.s32.totalorder %s19, 0
    %p130 = por %p128, %p129
    %s132 = sadd.s32 %s131, 1
    %p135 = scmp.eq.s32.totalorder %s13, 1
    %p136 = scmp.ne.s32.totalorder %s131, %s133
    %p137 = scmp.eq.s32.totalorder %s13, 0
    %p138 = por %p136, %p137
    %p139 = scmp.ne.s32.totalorder %s131, %s133
    %p140 = scmp.eq.s32.totalorder %s18, 1
    %p141 = por %p139, %p140
    %p142 = scmp.ne.s32.totalorder %s133, %s134
    %p143 = scmp.eq.s32.totalorder %s18, 0
    %p144 = por %p142, %p143
    %p145 = scmp.ne.s32.totalorder %s133, %s134
    %p146 = scmp.eq.s32.totalorder %s19, 1
    %p147 = por %p145, %p146
    %p149 = scmp.ne.s32.totalorder %s134, %s148
    %p150 = scmp.eq.s32.totalorder %s19, 0
    %p151 = por %p149, %p150
    %s153 = sadd.s32 %s152, 1
    %p156 = scmp.eq.s32.totalorder %s13, 1
    %p157 = scmp.ne.s32.totalorder %s152, %s154
    %p158 = scmp.eq.s32.totalorder %s13, 0
    %p159 = por %p157, %p158
    %p160 = scmp.ne.s32.totalorder %s152, %s154
    %p161 = scmp.eq.s32.totalorder %s18, 1
    %p162 = por %p160, %p161
    %p163 = scmp.ne.s32.totalorder %s154, %s155
    %p164 = scmp.eq.s32.totalorder %s18, 0
    %p165 = por %p163, %p164
    %p166 = scmp.ne.s32.totalorder %s154, %s155
    %p167 = scmp.eq.s32.totalorder %s19, 1
    %p168 = por %p166, %p167
    %p170 = scmp.ne.s32.totalorder %s155, %s169
    %p171 = scmp.eq.s32.totalorder %s19, 0
    %p172 = por %p170, %p171
    %s173 = ssub.s32 %s13, %s20
    %p174 = scmp.eq.s32.totalorder %s173, 0
    %s176 = sadd.s32 %s175, 1
    %s177 = scalar_select %p174, %s175, %s176
    %p180 = pneg %p174
    %p181 = scmp.eq.s32.totalorder %s13, 1
    %p182 = por %p180, %p181
    %p183 = scmp.ne.s32.totalorder %s175, %s178
    %p184 = scmp.eq.s32.totalorder %s13, 0
    %p185 = por %p183, %p184
    %p186 = scmp.ne.s32.totalorder %s175, %s178
    %p187 = scmp.eq.s32.totalorder %s18, 1
    %p188 = por %p186, %p187
    %p189 = scmp.ne.s32.totalorder %s178, %s179
    %p190 = scmp.eq.s32.totalorder %s18, 0
    %p191 = por %p189, %p190
    %p192 = scmp.ne.s32.totalorder %s178, %s179
    %p193 = scmp.eq.s32.totalorder %s19, 1
    %p194 = por %p192, %p193
    %p196 = scmp.ne.s32.totalorder %s179, %s195
    %p197 = scmp.eq.s32.totalorder %s19, 0
    %p198 = por %p196, %p197
    %p199 = scmp.le.s32.totalorder 1, %s13
    %p200 = scmp.lt.s32.totalorder %s13, 3
    %p201 = pnand %p199, %p200
    %p202 = pneg %p201
    // Predicated region
    $region9: #{bottleneck_forward_nchw.1} parent=5 // pred_check
      _
    $region10: #{bottleneck_forward_nchw.1} parent=5 // pred_check_branch
      %204 = sbr.rel (%p201) target = $region12
    $region11: #{bottleneck_forward_nchw.1} parent=5 // pred_region
      %s205 = ssub.s32 %s13, 1
      // Predicated region
      $region13: #{bottleneck_forward_nchw.1} parent=11 // pred_check
        %p206 = pneg %p60
      $region14: #{bottleneck_forward_nchw.1} parent=11 // pred_check_branch
        %208 = sbr.rel (%p206) target = $region16
      $region15: #{bottleneck_forward_nchw.1} parent=11 // pred_region
        _
      $region16: #{bottleneck_forward_nchw.1} parent=11 // pred_fallthru
        _
      // Predicated region
      $region17: #{bottleneck_forward_nchw.1} parent=11 // pred_check
        %p209 = pneg %p81
      $region18: #{bottleneck_forward_nchw.1} parent=11 // pred_check_branch
        %211 = sbr.rel (%p209) target = $region20
      $region19: #{bottleneck_forward_nchw.1} parent=11 // pred_region
        _
      $region20: #{bottleneck_forward_nchw.1} parent=11 // pred_fallthru
        _
      // Predicated region
      $region21: #{bottleneck_forward_nchw.1} parent=11 // pred_check
        %p212 = pneg %p102
      $region22: #{bottleneck_forward_nchw.1} parent=11 // pred_check_branch
        %214 = sbr.rel (%p212) target = $region24
      $region23: #{bottleneck_forward_nchw.1} parent=11 // pred_region
        _
      $region24: #{bottleneck_forward_nchw.1} parent=11 // pred_fallthru
        _
      // Predicated region
      $region25: #{bottleneck_forward_nchw.1} parent=11 // pred_check
        %p215 = pneg %p123
      $region26: #{bottleneck_forward_nchw.1} parent=11 // pred_check_branch
        %217 = sbr.rel (%p215) target = $region28
      $region27: #{bottleneck_forward_nchw.1} parent=11 // pred_region
        _
      $region28: #{bottleneck_forward_nchw.1} parent=11 // pred_fallthru
        _
      // Predicated region
      $region29: #{bottleneck_forward_nchw.1} parent=11 // pred_check
        %p218 = pneg %p144
      $region30: #{bottleneck_forward_nchw.1} parent=11 // pred_check_branch
        %220 = sbr.rel (%p218) target = $region32
      $region31: #{bottleneck_forward_nchw.1} parent=11 // pred_region
        _
      $region32: #{bottleneck_forward_nchw.1} parent=11 // pred_fallthru
        _
      // Predicated region
      $region33: #{bottleneck_forward_nchw.1} parent=11 // pred_check
        %p221 = pneg %p165
      $region34: #{bottleneck_forward_nchw.1} parent=11 // pred_check_branch
        %223 = sbr.rel (%p221) target = $region36
      $region35: #{bottleneck_forward_nchw.1} parent=11 // pred_region
        _
      $region36: #{bottleneck_forward_nchw.1} parent=11 // pred_fallthru
        _
    $region12: #{bottleneck_forward_nchw.1} parent=5 // pred_fallthru
      _
    %p224 = scmp.lt.s32.totalorder %s13, 2
    // Predicated region
    $region37: #{bottleneck_forward_nchw.1} parent=5 // pred_check
      %p225 = pneg %p224
    $region38: #{bottleneck_forward_nchw.1} parent=5 // pred_check_branch
      %227 = sbr.rel (%p225) target = $region40
    $region39: #{bottleneck_forward_nchw.1} parent=5 // pred_region
      // Predicated region
      $region41: #{bottleneck_forward_nchw.1} parent=39 // pred_check
        %p228 = pneg %p33
      $region42: #{bottleneck_forward_nchw.1} parent=39 // pred_check_branch
        %230 = sbr.rel (%p228) target = $region44
      $region43: #{bottleneck_forward_nchw.1} parent=39 // pred_region
        %p231 = scmp.lt.s32.totalorder %s13, 1
        %s232 = scalar_select %p231, %s13, 1
        %s233 = smul.addr %s232, 32
        %s234 = smul.addr %s233, 4
        %s235 = scalar_lea.vmem %s0, %s234
      $region44: #{bottleneck_forward_nchw.1} parent=39 // pred_fallthru
        _
    $region40: #{bottleneck_forward_nchw.1} parent=5 // pred_fallthru
      _
    %p236 = scmp.le.s32.totalorder 1, %s13
    %p237 = scmp.lt.s32.totalorder %s13, 3
    %p238 = pnand %p236, %p237
    %p239 = pneg %p238
    // Predicated region
    $region45: #{bottleneck_forward_nchw.1} parent=5 // pred_check
      _
    $region46: #{bottleneck_forward_nchw.1} parent=5 // pred_check_branch
      %241 = sbr.rel (%p238) target = $region48
    $region47: #{bottleneck_forward_nchw.1} parent=5 // pred_region
      %s242 = ssub.s32 %s13, 1
      %p243 = scmp.lt.s32.totalorder %s18, 1
      %s244 = scalar_select %p243, %s18, 1
      %s245 = smul.addr %s244, 32
      %s246 = smul.addr %s245, 4
      %s247 = scalar_lea.vmem %s0, %s246
      %p248 = pneg %p39
      %p249 = pneg %p36
      %p250 = pneg %p60
      %p251 = pneg %p57
      %p252 = pneg %p81
      %p253 = pneg %p78
      %p254 = pneg %p102
      %p255 = pneg %p99
      %p256 = pneg %p123
      %p257 = pneg %p120
      %p258 = pneg %p144
      %p259 = pneg %p141
      %p260 = pneg %p165
      %p261 = pneg %p162
      %p262 = pneg %p191
      %p263 = pneg %p188
      %p264 = scmp.lt.s32.totalorder %s18, 1
      %s265 = scalar_select %p264, %s18, 1
      %s266 = smul.addr %s265, 32
      %s267 = smul.addr %s266, 8
      %s268 = scalar_lea.vmem %s7, %s267
      %p269 = scmp.lt.s32.totalorder %s18, 1
      %s270 = scalar_select %p269, %s18, 1
      %s271 = smul.addr %s270, 32
      %s272 = smul.addr %s271, 4
      %s273 = scalar_lea.vmem %s0, %s272
      %p274 = scmp.lt.s32.totalorder %s18, 1
      %s275 = scalar_select %p274, %s18, 1
      %s276 = smul.addr %s275, 32
      %s277 = smul.addr %s276, 8
      %s278 = scalar_lea.vmem %s7, %s277
      %v280 = vld [vmem:[%s273] sm:$0xf]
      %v281 = vld [vmem:[%s273 + $0x4] sm:$0xf]
      %v282 = vld [vmem:[%s273 + $0x8] sm:$0xf]
      %v283 = vld [vmem:[%s273 + $0xc] sm:$0xf]
      %v284 = vld [vmem:[%s273 + $0x10] sm:$0xf]
      %v285 = vld [vmem:[%s273 + $0x14] sm:$0xf]
      %v286 = vld [vmem:[%s273 + $0x18] sm:$0xf]
      %v287 = vld [vmem:[%s273 + $0x1c] sm:$0xf]
      %v288 = vld [vmem:[%s273 + $0x20] sm:$0xf]
      %v289 = vld [vmem:[%s273 + $0x24] sm:$0xf]
      %v290 = vld [vmem:[%s273 + $0x28] sm:$0xf]
      %v291 = vld [vmem:[%s273 + $0x2c] sm:$0xf]
      %v292 = vld [vmem:[%s273 + $0x30] sm:$0xf]
      %v293 = vld [vmem:[%s273 + $0x34] sm:$0xf]
      %v294 = vld [vmem:[%s273 + $0x38] sm:$0xf]
      %v295 = vld [vmem:[%s273 + $0x3c] sm:$0xf]
      %v296 = vld [vmem:[%s273 + $0x40] sm:$0xf]
      %v297 = vld [vmem:[%s273 + $0x44] sm:$0xf]
      %v298 = vld [vmem:[%s273 + $0x48] sm:$0xf]
      %v299 = vld [vmem:[%s273 + $0x4c] sm:$0xf]
      %v300 = vld [vmem:[%s273 + $0x50] sm:$0xf]
      %v301 = vld [vmem:[%s273 + $0x54] sm:$0xf]
      %v302 = vld [vmem:[%s273 + $0x58] sm:$0xf]
      %v303 = vld [vmem:[%s273 + $0x5c] sm:$0xf]
      %v304 = vld [vmem:[%s273 + $0x60] sm:$0xf]
      %v305 = vld [vmem:[%s273 + $0x64] sm:$0xf]
      %v306 = vld [vmem:[%s273 + $0x68] sm:$0xf]
      %v307 = vld [vmem:[%s273 + $0x6c] sm:$0xf]
      %v308 = vld [vmem:[%s273 + $0x70] sm:$0xf]
      %v309 = vld [vmem:[%s273 + $0x74] sm:$0xf]
      %v310 = vld [vmem:[%s273 + $0x78] sm:$0xf]
      %v311 = vld [vmem:[%s273 + $0x7c] sm:$0xf]
      %v312 = vunpack.c.l.bf16 %v280
      %v313 = vunpack.c.l.bf16 %v281
      %v314 = vunpack.c.l.bf16 %v282
      %v315 = vunpack.c.l.bf16 %v283
      %v316 = vunpack.c.l.bf16 %v284
      %v317 = vunpack.c.l.bf16 %v285
      %v318 = vunpack.c.l.bf16 %v286
      %v319 = vunpack.c.l.bf16 %v287
      %v320 = vunpack.c.l.bf16 %v288
      %v321 = vunpack.c.l.bf16 %v289
      %v322 = vunpack.c.l.bf16 %v290
      %v323 = vunpack.c.l.bf16 %v291
      %v324 = vunpack.c.l.bf16 %v292
      %v325 = vunpack.c.l.bf16 %v293
      %v326 = vunpack.c.l.bf16 %v294
      %v327 = vunpack.c.l.bf16 %v295
      %v328 = vunpack.c.l.bf16 %v296
      %v329 = vunpack.c.l.bf16 %v297
      %v330 = vunpack.c.l.bf16 %v298
      %v331 = vunpack.c.l.bf16 %v299
      %v332 = vunpack.c.l.bf16 %v300
      %v333 = vunpack.c.l.bf16 %v301
      %v334 = vunpack.c.l.bf16 %v302
      %v335 = vunpack.c.l.bf16 %v303
      %v336 = vunpack.c.l.bf16 %v304
      %v337 = vunpack.c.l.bf16 %v305
      %v338 = vunpack.c.l.bf16 %v306
      %v339 = vunpack.c.l.bf16 %v307
      %v340 = vunpack.c.l.bf16 %v308
      %v341 = vunpack.c.l.bf16 %v309
      %v342 = vunpack.c.l.bf16 %v310
      %v343 = vunpack.c.l.bf16 %v311
      %v344 = vpack.c.bf16 %v313, %v312
      %v345 = vpack.c.bf16 %v315, %v314
      %v346 = vpack.c.bf16 %v317, %v316
      %v347 = vpack.c.bf16 %v319, %v318
      %v348 = vpack.c.bf16 %v321, %v320
      %v349 = vpack.c.bf16 %v323, %v322
      %v350 = vpack.c.bf16 %v325, %v324
      %v351 = vpack.c.bf16 %v327, %v326
      %v352 = vpack.c.bf16 %v329, %v328
      %v353 = vpack.c.bf16 %v331, %v330
      %v354 = vpack.c.bf16 %v333, %v332
      %v355 = vpack.c.bf16 %v335, %v334
      %v356 = vpack.c.bf16 %v337, %v336
      %v357 = vpack.c.bf16 %v339, %v338
      %v358 = vpack.c.bf16 %v341, %v340
      %v359 = vpack.c.bf16 %v343, %v342
      %v360 = vld [vmem:[%s1] sm:$0xf]
      %v361 = vld [vmem:[%s1 + $0x4] sm:$0xf]
      %v362 = vld [vmem:[%s2] sm:$0x1]
      %v364 = vperm.slane %v362, 0
      %v368 = vunpack.c.l.b16 %v360
      %v369 = vunpack.c.l.b16 %v361
      %v370 = vpack.c.b16 %v369, %v368
      %vm372 = vcmask 130048
      %v374 = vsel %vm372, %v344, 0
      %v377 = vsel %vm372, %v345, 0
      %v380 = vsel %vm372, %v346, 0
      %v383 = vsel %vm372, %v347, 0
      %v386 = vsel %vm372, %v348, 0
      %v389 = vsel %vm372, %v349, 0
      %v392 = vsel %vm372, %v350, 0
      %v395 = vsel %vm372, %v351, 0
      %v398 = vsel %vm372, %v352, 0
      %v401 = vsel %vm372, %v353, 0
      %v404 = vsel %vm372, %v354, 0
      %v407 = vsel %vm372, %v355, 0
      %v410 = vsel %vm372, %v356, 0
      %v413 = vsel %vm372, %v357, 0
      %v416 = vsel %vm372, %v358, 0
      %v419 = vsel %vm372, %v359, 0
      %421 = vmatpush.bf16.msra.mxu0 0
      %422 = vmatpush.bf16.msra.mxu0 0
      %423 = vmatpush.bf16.msra.mxu0 0
      %424 = vmatpush.bf16.msra.mxu0 0
      %425 = vmatpush.bf16.msra.mxu0 0
      %426 = vmatpush.bf16.msra.mxu0 0
      %427 = vmatpush.bf16.msra.mxu0 0
      %428 = vmatpush.bf16.msra.mxu0 %v370
      %429 = vmatmul.bf16.gmra.mxu0 %v374
      %v430 = vpop.f32.mrf.mxu0
      %v431 = vadd.f32 %v364, %v430
      %v432 = vpop.f32.mrf.mxu0
      %v433 = vadd.f32 %v364, %v432
      %434 = vmatmul.bf16.gmra.mxu0 %v377
      %v435 = vpop.f32.mrf.mxu0
      %v436 = vadd.f32 %v364, %v435
      %v437 = vpop.f32.mrf.mxu0
      %v438 = vadd.f32 %v364, %v437
      %439 = vmatmul.bf16.gmra.mxu0 %v380
      %v440 = vpop.f32.mrf.mxu0
      %v441 = vadd.f32 %v364, %v440
      %v442 = vpop.f32.mrf.mxu0
      %v443 = vadd.f32 %v364, %v442
      %444 = vmatmul.bf16.gmra.mxu0 %v383
      %v445 = vpop.f32.mrf.mxu0
      %v446 = vadd.f32 %v364, %v445
      %v447 = vpop.f32.mrf.mxu0
      %v448 = vadd.f32 %v364, %v447
      %449 = vmatmul.bf16.gmra.mxu0 %v386
      %v450 = vpop.f32.mrf.mxu0
      %v451 = vadd.f32 %v364, %v450
      %v452 = vpop.f32.mrf.mxu0
      %v453 = vadd.f32 %v364, %v452
      %454 = vmatmul.bf16.gmra.mxu0 %v389
      %v455 = vpop.f32.mrf.mxu0
      %v456 = vadd.f32 %v364, %v455
      %v457 = vpop.f32.mrf.mxu0
      %v458 = vadd.f32 %v364, %v457
      %459 = vmatmul.bf16.gmra.mxu0 %v392
      %v460 = vpop.f32.mrf.mxu0
      %v461 = vadd.f32 %v364, %v460
      %v462 = vpop.f32.mrf.mxu0
      %v463 = vadd.f32 %v364, %v462
      %464 = vmatmul.bf16.gmra.mxu0 %v395
      %v465 = vpop.f32.mrf.mxu0
      %v466 = vadd.f32 %v364, %v465
      %v467 = vpop.f32.mrf.mxu0
      %v468 = vadd.f32 %v364, %v467
      %469 = vmatmul.bf16.gmra.mxu0 %v398
      %v470 = vpop.f32.mrf.mxu0
      %v471 = vadd.f32 %v364, %v470
      %v472 = vpop.f32.mrf.mxu0
      %v473 = vadd.f32 %v364, %v472
      %474 = vmatmul.bf16.gmra.mxu0 %v401
      %v475 = vpop.f32.mrf.mxu0
      %v476 = vadd.f32 %v364, %v475
      %v477 = vpop.f32.mrf.mxu0
      %v478 = vadd.f32 %v364, %v477
      %479 = vmatmul.bf16.gmra.mxu0 %v404
      %v480 = vpop.f32.mrf.mxu0
      %v481 = vadd.f32 %v364, %v480
      %v482 = vpop.f32.mrf.mxu0
      %v483 = vadd.f32 %v364, %v482
      %484 = vmatmul.bf16.gmra.mxu0 %v407
      %v485 = vpop.f32.mrf.mxu0
      %v486 = vadd.f32 %v364, %v485
      %v487 = vpop.f32.mrf.mxu0
      %v488 = vadd.f32 %v364, %v487
      %489 = vmatmul.bf16.gmra.mxu0 %v410
      %v490 = vpop.f32.mrf.mxu0
      %v491 = vadd.f32 %v364, %v490
      %v492 = vpop.f32.mrf.mxu0
      %v493 = vadd.f32 %v364, %v492
      %494 = vmatmul.bf16.gmra.mxu0 %v413
      %v495 = vpop.f32.mrf.mxu0
      %v496 = vadd.f32 %v364, %v495
      %v497 = vpop.f32.mrf.mxu0
      %v498 = vadd.f32 %v364, %v497
      %499 = vmatmul.bf16.gmra.mxu0 %v416
      %v500 = vpop.f32.mrf.mxu0
      %v501 = vadd.f32 %v364, %v500
      %v502 = vpop.f32.mrf.mxu0
      %v503 = vadd.f32 %v364, %v502
      %504 = vmatmul.bf16.gmra.mxu0 %v419
      %v505 = vpop.f32.mrf.mxu0
      %v506 = vadd.f32 %v364, %v505
      %v507 = vpop.f32.mrf.mxu0
      %v508 = vadd.f32 %v364, %v507
      %509 = vdwg.mxu0
      %v510 = vmax.f32 %v431, 0.0
      %v511 = vmax.f32 %v433, 0.0
      %v512 = vmax.f32 %v436, 0.0
      %v513 = vmax.f32 %v438, 0.0
      %v514 = vmax.f32 %v441, 0.0
      %v515 = vmax.f32 %v443, 0.0
      %v516 = vmax.f32 %v446, 0.0
      %v517 = vmax.f32 %v448, 0.0
      %v518 = vmax.f32 %v451, 0.0
      %v519 = vmax.f32 %v453, 0.0
      %v520 = vmax.f32 %v456, 0.0
      %v521 = vmax.f32 %v458, 0.0
      %v522 = vmax.f32 %v461, 0.0
      %v523 = vmax.f32 %v463, 0.0
      %v524 = vmax.f32 %v466, 0.0
      %v525 = vmax.f32 %v468, 0.0
      %v526 = vmax.f32 %v471, 0.0
      %v527 = vmax.f32 %v473, 0.0
      %v528 = vmax.f32 %v476, 0.0
      %v529 = vmax.f32 %v478, 0.0
      %v530 = vmax.f32 %v481, 0.0
      %v531 = vmax.f32 %v483, 0.0
      %v532 = vmax.f32 %v486, 0.0
      %v533 = vmax.f32 %v488, 0.0
      %v534 = vmax.f32 %v491, 0.0
      %v535 = vmax.f32 %v493, 0.0
      %v536 = vmax.f32 %v496, 0.0
      %v537 = vmax.f32 %v498, 0.0
      %v538 = vmax.f32 %v501, 0.0
      %v539 = vmax.f32 %v503, 0.0
      %v540 = vmax.f32 %v506, 0.0
      %v541 = vmax.f32 %v508, 0.0
      %542 = vst [vmem:[#allocation2] sm:$0xff] 0.0
      %543 = vst [vmem:[#allocation2 + $0x8] sm:$0xff] 0.0
      %544 = vst [vmem:[#allocation2 + $0x10] sm:$0x3] 0.0
      %545 = vst [vmem:[#allocation2 + $0x18] sm:$0xff] 0.0
      %546 = vst [vmem:[#allocation2 + $0x20] sm:$0xff] 0.0
      %547 = vst [vmem:[#allocation2 + $0x28] sm:$0x3] 0.0
      %548 = vst [vmem:[#allocation2 + $0x30] sm:$0xff] 0.0
      %549 = vst [vmem:[#allocation2 + $0x38] sm:$0xff] 0.0
      %550 = vst [vmem:[#allocation2 + $0x40] sm:$0x3] 0.0
      %551 = vst [vmem:[#allocation2 + $0x48] sm:$0xff] 0.0
      %552 = vst [vmem:[#allocation2 + $0x50] sm:$0xff] 0.0
      %553 = vst [vmem:[#allocation2 + $0x58] sm:$0x3] 0.0
      %554 = vst [vmem:[#allocation2 + $0x60] sm:$0xff] 0.0
      %555 = vst [vmem:[#allocation2 + $0x68] sm:$0xff] 0.0
      %556 = vst [vmem:[#allocation2 + $0x70] sm:$0x3] 0.0
      %557 = vst [vmem:[#allocation2 + $0x78] sm:$0xff] 0.0
      %558 = vst [vmem:[#allocation2 + $0x80] sm:$0xff] 0.0
      %559 = vst [vmem:[#allocation2 + $0x88] sm:$0x3] 0.0
      %560 = vst [vmem:[#allocation2 + $0x90] sm:$0xff] 0.0
      %561 = vst [vmem:[#allocation2 + $0x98] sm:$0xff] 0.0
      %562 = vst [vmem:[#allocation2 + $0xa0] sm:$0x3] 0.0
      %563 = vst [vmem:[#allocation2 + $0xa8] sm:$0xff] 0.0
      %564 = vst [vmem:[#allocation2 + $0xb0] sm:$0xff] 0.0
      %565 = vst [vmem:[#allocation2 + $0xb8] sm:$0x3] 0.0
      %566 = vst [vmem:[#allocation2 + $0xc0] sm:$0xff] 0.0
      %567 = vst [vmem:[#allocation2 + $0xc8] sm:$0xff] 0.0
      %568 = vst [vmem:[#allocation2 + $0xd0] sm:$0x3] 0.0
      %569 = vst [vmem:[#allocation2 + $0xd8] sm:$0xff] 0.0
      %570 = vst [vmem:[#allocation2 + $0xe0] sm:$0xff] 0.0
      %571 = vst [vmem:[#allocation2 + $0xe8] sm:$0x3] 0.0
      %572 = vst [vmem:[#allocation2 + $0xf0] sm:$0xff] 0.0
      %573 = vst [vmem:[#allocation2 + $0xf8] sm:$0xff] 0.0
      %574 = vst [vmem:[#allocation2 + $0x100] sm:$0x3] 0.0
      %575 = vst [vmem:[#allocation2 + $0x108] sm:$0xff] 0.0
      %576 = vst [vmem:[#allocation2 + $0x110] sm:$0xff] 0.0
      %577 = vst [vmem:[#allocation2 + $0x118] sm:$0x3] 0.0
      %578 = vst [vmem:[#allocation2 + $0x120] sm:$0xff] 0.0
      %579 = vst [vmem:[#allocation2 + $0x128] sm:$0xff] 0.0
      %580 = vst [vmem:[#allocation2 + $0x130] sm:$0x3] 0.0
      %581 = vst [vmem:[#allocation2 + $0x138] sm:$0xff] 0.0
      %582 = vst [vmem:[#allocation2 + $0x140] sm:$0xff] 0.0
      %583 = vst [vmem:[#allocation2 + $0x148] sm:$0x3] 0.0
      %584 = vst [vmem:[#allocation2 + $0x150] sm:$0xff] 0.0
      %585 = vst [vmem:[#allocation2 + $0x158] sm:$0xff] 0.0
      %586 = vst [vmem:[#allocation2 + $0x160] sm:$0x3] 0.0
      %587 = vst [vmem:[#allocation2 + $0x168] sm:$0xff] 0.0
      %588 = vst [vmem:[#allocation2 + $0x170] sm:$0xff] 0.0
      %589 = vst [vmem:[#allocation2 + $0x178] sm:$0x3] 0.0
      %590 = vst [vmem:[#allocation2 + $0x180] sm:$0xff] 0.0
      %591 = vst [vmem:[#allocation2 + $0x188] sm:$0xff] 0.0
      %592 = vst [vmem:[#allocation2 + $0x190] sm:$0x3] 0.0
      %593 = vst [vmem:[#allocation2 + $0x198] sm:$0xff] 0.0
      %594 = vst [vmem:[#allocation2 + $0x1a0] sm:$0xff] 0.0
      %595 = vst [vmem:[#allocation2 + $0x1a8] sm:$0x3] 0.0
      %s596 = scalar_lea.vmem [#allocation2], 24
      %597 = vst [vmem:[%s596 + $0x1] sm:$0xff] %v510
      %598 = vst [vmem:[%s596 + $0x9] sm:$0xff] %v511
      %599 = vst [vmem:[%s596 + $0x19] sm:$0xff] %v512
      %600 = vst [vmem:[%s596 + $0x21] sm:$0xff] %v513
      %601 = vst [vmem:[%s596 + $0x31] sm:$0xff] %v514
      %602 = vst [vmem:[%s596 + $0x39] sm:$0xff] %v515
      %603 = vst [vmem:[%s596 + $0x49] sm:$0xff] %v516
      %604 = vst [vmem:[%s596 + $0x51] sm:$0xff] %v517
      %605 = vst [vmem:[%s596 + $0x61] sm:$0xff] %v518
      %606 = vst [vmem:[%s596 + $0x69] sm:$0xff] %v519
      %607 = vst [vmem:[%s596 + $0x79] sm:$0xff] %v520
      %608 = vst [vmem:[%s596 + $0x81] sm:$0xff] %v521
      %609 = vst [vmem:[%s596 + $0x91] sm:$0xff] %v522
      %610 = vst [vmem:[%s596 + $0x99] sm:$0xff] %v523
      %611 = vst [vmem:[%s596 + $0xa9] sm:$0xff] %v524
      %612 = vst [vmem:[%s596 + $0xb1] sm:$0xff] %v525
      %613 = vst [vmem:[%s596 + $0xc1] sm:$0xff] %v526
      %614 = vst [vmem:[%s596 + $0xc9] sm:$0xff] %v527
      %615 = vst [vmem:[%s596 + $0xd9] sm:$0xff] %v528
      %616 = vst [vmem:[%s596 + $0xe1] sm:$0xff] %v529
      %617 = vst [vmem:[%s596 + $0xf1] sm:$0xff] %v530
      %618 = vst [vmem:[%s596 + $0xf9] sm:$0xff] %v531
      %619 = vst [vmem:[%s596 + $0x109] sm:$0xff] %v532
      %620 = vst [vmem:[%s596 + $0x111] sm:$0xff] %v533
      %621 = vst [vmem:[%s596 + $0x121] sm:$0xff] %v534
      %622 = vst [vmem:[%s596 + $0x129] sm:$0xff] %v535
      %623 = vst [vmem:[%s596 + $0x139] sm:$0xff] %v536
      %624 = vst [vmem:[%s596 + $0x141] sm:$0xff] %v537
      %625 = vst [vmem:[%s596 + $0x151] sm:$0xff] %v538
      %626 = vst [vmem:[%s596 + $0x159] sm:$0xff] %v539
      %627 = vst [vmem:[%s596 + $0x169] sm:$0xff] %v540
      %628 = vst [vmem:[%s596 + $0x171] sm:$0xff] %v541
      %v629 = vld [vmem:[#allocation2] sm:$0xff]
      %v630 = vld [vmem:[#allocation2 + $0x8] sm:$0xff]
      %v631 = vld [vmem:[#allocation2 + $0x10] sm:$0x3]
      %v632 = vld [vmem:[#allocation2 + $0x18] sm:$0xff]
      %v633 = vld [vmem:[#allocation2 + $0x20] sm:$0xff]
      %v634 = vld [vmem:[#allocation2 + $0x28] sm:$0x3]
      %v635 = vld [vmem:[#allocation2 + $0x30] sm:$0xff]
      %v636 = vld [vmem:[#allocation2 + $0x38] sm:$0xff]
      %v637 = vld [vmem:[#allocation2 + $0x40] sm:$0x3]
      %v638 = vld [vmem:[#allocation2 + $0x48] sm:$0xff]
      %v639 = vld [vmem:[#allocation2 + $0x50] sm:$0xff]
      %v640 = vld [vmem:[#allocation2 + $0x58] sm:$0x3]
      %v641 = vld [vmem:[#allocation2 + $0x60] sm:$0xff]
      %v642 = vld [vmem:[#allocation2 + $0x68] sm:$0xff]
      %v643 = vld [vmem:[#allocation2 + $0x70] sm:$0x3]
      %v644 = vld [vmem:[#allocation2 + $0x78] sm:$0xff]
      %v645 = vld [vmem:[#allocation2 + $0x80] sm:$0xff]
      %v646 = vld [vmem:[#allocation2 + $0x88] sm:$0x3]
      %v647 = vld [vmem:[#allocation2 + $0x90] sm:$0xff]
      %v648 = vld [vmem:[#allocation2 + $0x98] sm:$0xff]
      %v649 = vld [vmem:[#allocation2 + $0xa0] sm:$0x3]
      %v650 = vld [vmem:[#allocation2 + $0xa8] sm:$0xff]
      %v651 = vld [vmem:[#allocation2 + $0xb0] sm:$0xff]
      %v652 = vld [vmem:[#allocation2 + $0xb8] sm:$0x3]
      %v653 = vld [vmem:[#allocation2 + $0xc0] sm:$0xff]
      %v654 = vld [vmem:[#allocation2 + $0xc8] sm:$0xff]
      %v655 = vld [vmem:[#allocation2 + $0xd0] sm:$0x3]
      %v656 = vld [vmem:[#allocation2 + $0xd8] sm:$0xff]
      %v657 = vld [vmem:[#allocation2 + $0xe0] sm:$0xff]
      %v658 = vld [vmem:[#allocation2 + $0xe8] sm:$0x3]
      %v659 = vld [vmem:[#allocation2 + $0xf0] sm:$0xff]
      %v660 = vld [vmem:[#allocation2 + $0xf8] sm:$0xff]
      %v661 = vld [vmem:[#allocation2 + $0x100] sm:$0x3]
      %v662 = vld [vmem:[#allocation2 + $0x108] sm:$0xff]
      %v663 = vld [vmem:[#allocation2 + $0x110] sm:$0xff]
      %v664 = vld [vmem:[#allocation2 + $0x118] sm:$0x3]
      %v665 = vld [vmem:[#allocation2 + $0x120] sm:$0xff]
      %v666 = vld [vmem:[#allocation2 + $0x128] sm:$0xff]
      %v667 = vld [vmem:[#allocation2 + $0x130] sm:$0x3]
      %v668 = vld [vmem:[#allocation2 + $0x138] sm:$0xff]
      %v669 = vld [vmem:[#allocation2 + $0x140] sm:$0xff]
      %v670 = vld [vmem:[#allocation2 + $0x148] sm:$0x3]
      %v671 = vld [vmem:[#allocation2 + $0x150] sm:$0xff]
      %v672 = vld [vmem:[#allocation2 + $0x158] sm:$0xff]
      %v673 = vld [vmem:[#allocation2 + $0x160] sm:$0x3]
      %v674 = vld [vmem:[#allocation2 + $0x168] sm:$0xff]
      %v675 = vld [vmem:[#allocation2 + $0x170] sm:$0xff]
      %v676 = vld [vmem:[#allocation2 + $0x178] sm:$0x3]
      %v677 = vld [vmem:[#allocation2 + $0x180] sm:$0xff]
      %v678 = vld [vmem:[#allocation2 + $0x188] sm:$0xff]
      %v679 = vld [vmem:[#allocation2 + $0x190] sm:$0x3]
      %v680 = vld [vmem:[#allocation2 + $0x198] sm:$0xff]
      %v681 = vld [vmem:[#allocation2 + $0x1a0] sm:$0xff]
      %v682 = vld [vmem:[#allocation2 + $0x1a8] sm:$0x3]
      %vm731 = vcmask 1046528
      %v732 = vrot.slane %v629, 1
      %v733 = vrot.slane %v630, 1
      %v734 = vsel %vm731, %v732, %v733
      %v735 = vrot.slane %v631, 1
      %v736 = vsel %vm731, %v733, %v735
      %v737 = vrot.slane %v632, 1
      %v738 = vrot.slane %v633, 1
      %v739 = vsel %vm731, %v737, %v738
      %v740 = vrot.slane %v634, 1
      %v741 = vsel %vm731, %v738, %v740
      %v742 = vrot.slane %v635, 1
      %v743 = vrot.slane %v636, 1
      %v744 = vsel %vm731, %v742, %v743
      %v745 = vrot.slane %v637, 1
      %v746 = vsel %vm731, %v743, %v745
      %v747 = vrot.slane %v638, 1
      %v748 = vrot.slane %v639, 1
      %v749 = vsel %vm731, %v747, %v748
      %v750 = vrot.slane %v640, 1
      %v751 = vsel %vm731, %v748, %v750
      %v752 = vrot.slane %v641, 1
      %v753 = vrot.slane %v642, 1
      %v754 = vsel %vm731, %v752, %v753
      %v755 = vrot.slane %v643, 1
      %v756 = vsel %vm731, %v753, %v755
      %v757 = vrot.slane %v644, 1
      %v758 = vrot.slane %v645, 1
      %v759 = vsel %vm731, %v757, %v758
      %v760 = vrot.slane %v646, 1
      %v761 = vsel %vm731, %v758, %v760
      %v762 = vrot.slane %v647, 1
      %v763 = vrot.slane %v648, 1
      %v764 = vsel %vm731, %v762, %v763
      %v765 = vrot.slane %v649, 1
      %v766 = vsel %vm731, %v763, %v765
      %v767 = vrot.slane %v650, 1
      %v768 = vrot.slane %v651, 1
      %v769 = vsel %vm731, %v767, %v768
      %v770 = vrot.slane %v652, 1
      %v771 = vsel %vm731, %v768, %v770
      %v772 = vrot.slane %v653, 1
      %v773 = vrot.slane %v654, 1
      %v774 = vsel %vm731, %v772, %v773
      %v775 = vrot.slane %v655, 1
      %v776 = vsel %vm731, %v773, %v775
      %v777 = vrot.slane %v656, 1
      %v778 = vrot.slane %v657, 1
      %v779 = vsel %vm731, %v777, %v778
      %v780 = vrot.slane %v658, 1
      %v781 = vsel %vm731, %v778, %v780
      %v782 = vrot.slane %v659, 1
      %v783 = vrot.slane %v660, 1
      %v784 = vsel %vm731, %v782, %v783
      %v785 = vrot.slane %v661, 1
      %v786 = vsel %vm731, %v783, %v785
      %v787 = vrot.slane %v662, 1
      %v788 = vrot.slane %v663, 1
      %v789 = vsel %vm731, %v787, %v788
      %v790 = vrot.slane %v664, 1
      %v791 = vsel %vm731, %v788, %v790
      %v792 = vrot.slane %v665, 1
      %v793 = vrot.slane %v666, 1
      %v794 = vsel %vm731, %v792, %v793
      %v795 = vrot.slane %v667, 1
      %v796 = vsel %vm731, %v793, %v795
      %v797 = vrot.slane %v668, 1
      %v798 = vrot.slane %v669, 1
      %v799 = vsel %vm731, %v797, %v798
      %v800 = vrot.slane %v670, 1
      %v801 = vsel %vm731, %v798, %v800
      %v802 = vrot.slane %v671, 1
      %v803 = vrot.slane %v672, 1
      %v804 = vsel %vm731, %v802, %v803
      %v805 = vrot.slane %v673, 1
      %v806 = vsel %vm731, %v803, %v805
      %v807 = vrot.slane %v674, 1
      %v808 = vrot.slane %v675, 1
      %v809 = vsel %vm731, %v807, %v808
      %v810 = vrot.slane %v676, 1
      %v811 = vsel %vm731, %v808, %v810
      %vm844 = vcmask 1045504
      %v845 = vrot.slane %v629, 2
      %v846 = vrot.slane %v630, 2
      %v847 = vsel %vm844, %v845, %v846
      %v848 = vrot.slane %v631, 2
      %v849 = vsel %vm844, %v846, %v848
      %v850 = vrot.slane %v632, 2
      %v851 = vrot.slane %v633, 2
      %v852 = vsel %vm844, %v850, %v851
      %v853 = vrot.slane %v634, 2
      %v854 = vsel %vm844, %v851, %v853
      %v855 = vrot.slane %v635, 2
      %v856 = vrot.slane %v636, 2
      %v857 = vsel %vm844, %v855, %v856
      %v858 = vrot.slane %v637, 2
      %v859 = vsel %vm844, %v856, %v858
      %v860 = vrot.slane %v638, 2
      %v861 = vrot.slane %v639, 2
      %v862 = vsel %vm844, %v860, %v861
      %v863 = vrot.slane %v640, 2
      %v864 = vsel %vm844, %v861, %v863
      %v865 = vrot.slane %v641, 2
      %v866 = vrot.slane %v642, 2
      %v867 = vsel %vm844, %v865, %v866
      %v868 = vrot.slane %v643, 2
      %v869 = vsel %vm844, %v866, %v868
      %v870 = vrot.slane %v644, 2
      %v871 = vrot.slane %v645, 2
      %v872 = vsel %vm844, %v870, %v871
      %v873 = vrot.slane %v646, 2
      %v874 = vsel %vm844, %v871, %v873
      %v875 = vrot.slane %v647, 2
      %v876 = vrot.slane %v648, 2
      %v877 = vsel %vm844, %v875, %v876
      %v878 = vrot.slane %v649, 2
      %v879 = vsel %vm844, %v876, %v878
      %v880 = vrot.slane %v650, 2
      %v881 = vrot.slane %v651, 2
      %v882 = vsel %vm844, %v880, %v881
      %v883 = vrot.slane %v652, 2
      %v884 = vsel %vm844, %v881, %v883
      %v885 = vrot.slane %v653, 2
      %v886 = vrot.slane %v654, 2
      %v887 = vsel %vm844, %v885, %v886
      %v888 = vrot.slane %v655, 2
      %v889 = vsel %vm844, %v886, %v888
      %v890 = vrot.slane %v656, 2
      %v891 = vrot.slane %v657, 2
      %v892 = vsel %vm844, %v890, %v891
      %v893 = vrot.slane %v658, 2
      %v894 = vsel %vm844, %v891, %v893
      %v895 = vrot.slane %v659, 2
      %v896 = vrot.slane %v660, 2
      %v897 = vsel %vm844, %v895, %v896
      %v898 = vrot.slane %v661, 2
      %v899 = vsel %vm844, %v896, %v898
      %v900 = vrot.slane %v662, 2
      %v901 = vrot.slane %v663, 2
      %v902 = vsel %vm844, %v900, %v901
      %v903 = vrot.slane %v664, 2
      %v904 = vsel %vm844, %v901, %v903
      %v905 = vrot.slane %v665, 2
      %v906 = vrot.slane %v666, 2
      %v907 = vsel %vm844, %v905, %v906
      %v908 = vrot.slane %v667, 2
      %v909 = vsel %vm844, %v906, %v908
      %v910 = vrot.slane %v668, 2
      %v911 = vrot.slane %v669, 2
      %v912 = vsel %vm844, %v910, %v911
      %v913 = vrot.slane %v670, 2
      %v914 = vsel %vm844, %v911, %v913
      %v915 = vrot.slane %v671, 2
      %v916 = vrot.slane %v672, 2
      %v917 = vsel %vm844, %v915, %v916
      %v918 = vrot.slane %v673, 2
      %v919 = vsel %vm844, %v916, %v918
      %v920 = vrot.slane %v674, 2
      %v921 = vrot.slane %v675, 2
      %v922 = vsel %vm844, %v920, %v921
      %v923 = vrot.slane %v676, 2
      %v924 = vsel %vm844, %v921, %v923
      %v960 = vrot.slane %v677, 1
      %v961 = vrot.slane %v678, 1
      %v962 = vsel %vm731, %v960, %v961
      %v963 = vrot.slane %v679, 1
      %v964 = vsel %vm731, %v961, %v963
      %v967 = vrot.slane %v677, 2
      %v968 = vrot.slane %v678, 2
      %v969 = vsel %vm844, %v967, %v968
      %v970 = vrot.slane %v679, 2
      %v971 = vsel %vm844, %v968, %v970
      %v977 = vrot.slane %v680, 1
      %v978 = vrot.slane %v681, 1
      %v979 = vsel %vm731, %v977, %v978
      %v980 = vrot.slane %v682, 1
      %v981 = vsel %vm731, %v978, %v980
      %v984 = vrot.slane %v680, 2
      %v985 = vrot.slane %v681, 2
      %v986 = vsel %vm844, %v984, %v985
      %v987 = vrot.slane %v682, 2
      %v988 = vsel %vm844, %v985, %v987
      %v991 = vpack.c.bf16 %v630, %v629
      %v992 = vpack.c.bf16 %v736, %v734
      %v993 = vpack.c.bf16 %v849, %v847
      %v994 = vpack.c.bf16 %v633, %v632
      %v995 = vpack.c.bf16 %v741, %v739
      %v996 = vpack.c.bf16 %v854, %v852
      %v997 = vpack.c.bf16 %v636, %v635
      %v998 = vpack.c.bf16 %v746, %v744
      %v999 = vpack.c.bf16 %v859, %v857
      %v1000 = vpack.c.bf16 %v639, %v638
      %v1001 = vpack.c.bf16 %v751, %v749
      %v1002 = vpack.c.bf16 %v864, %v862
      %v1003 = vpack.c.bf16 %v642, %v641
      %v1004 = vpack.c.bf16 %v756, %v754
      %v1005 = vpack.c.bf16 %v869, %v867
      %v1006 = vpack.c.bf16 %v645, %v644
      %v1007 = vpack.c.bf16 %v761, %v759
      %v1008 = vpack.c.bf16 %v874, %v872
      %v1009 = vpack.c.bf16 %v648, %v647
      %v1010 = vpack.c.bf16 %v766, %v764
      %v1011 = vpack.c.bf16 %v879, %v877
      %v1012 = vpack.c.bf16 %v651, %v650
      %v1013 = vpack.c.bf16 %v771, %v769
      %v1014 = vpack.c.bf16 %v884, %v882
      %v1015 = vpack.c.bf16 %v654, %v653
      %v1016 = vpack.c.bf16 %v776, %v774
      %v1017 = vpack.c.bf16 %v889, %v887
      %v1018 = vpack.c.bf16 %v657, %v656
      %v1019 = vpack.c.bf16 %v781, %v779
      %v1020 = vpack.c.bf16 %v894, %v892
      %v1021 = vpack.c.bf16 %v660, %v659
      %v1022 = vpack.c.bf16 %v786, %v784
      %v1023 = vpack.c.bf16 %v899, %v897
      %v1024 = vpack.c.bf16 %v663, %v662
      %v1025 = vpack.c.bf16 %v791, %v789
      %v1026 = vpack.c.bf16 %v904, %v902
      %v1027 = vpack.c.bf16 %v666, %v665
      %v1028 = vpack.c.bf16 %v796, %v794
      %v1029 = vpack.c.bf16 %v909, %v907
      %v1030 = vpack.c.bf16 %v669, %v668
      %v1031 = vpack.c.bf16 %v801, %v799
      %v1032 = vpack.c.bf16 %v914, %v912
      %v1033 = vpack.c.bf16 %v672, %v671
      %v1034 = vpack.c.bf16 %v806, %v804
      %v1035 = vpack.c.bf16 %v919, %v917
      %v1036 = vpack.c.bf16 %v675, %v674
      %v1037 = vpack.c.bf16 %v811, %v809
      %v1038 = vpack.c.bf16 %v924, %v922
      %v1039 = vpack.c.bf16 %v678, %v677
      %v1040 = vpack.c.bf16 %v964, %v962
      %v1041 = vpack.c.bf16 %v971, %v969
      %v1042 = vpack.c.bf16 %v681, %v680
      %v1043 = vpack.c.bf16 %v981, %v979
      %v1044 = vpack.c.bf16 %v988, %v986
      %v1045 = vld [vmem:[%s3] sm:$0xf]
      %v1046 = vld [vmem:[%s3 + $0x4] sm:$0xf]
      %v1047 = vld [vmem:[%s3 + $0x8] sm:$0xf]
      %v1048 = vld [vmem:[%s3 + $0xc] sm:$0xf]
      %v1049 = vld [vmem:[%s3 + $0x10] sm:$0xf]
      %v1050 = vld [vmem:[%s3 + $0x14] sm:$0xf]
      %v1051 = vld [vmem:[%s3 + $0x18] sm:$0xf]
      %v1052 = vld [vmem:[%s3 + $0x1c] sm:$0xf]
      %v1053 = vld [vmem:[%s3 + $0x20] sm:$0xf]
      %v1054 = vld [vmem:[%s3 + $0x24] sm:$0xf]
      %v1055 = vld [vmem:[%s3 + $0x28] sm:$0xf]
      %v1056 = vld [vmem:[%s3 + $0x2c] sm:$0xf]
      %v1057 = vld [vmem:[%s3 + $0x30] sm:$0xf]
      %v1058 = vld [vmem:[%s3 + $0x34] sm:$0xf]
      %v1059 = vld [vmem:[%s3 + $0x38] sm:$0xf]
      %v1060 = vld [vmem:[%s3 + $0x3c] sm:$0xf]
      %v1061 = vld [vmem:[%s3 + $0x40] sm:$0xf]
      %v1062 = vld [vmem:[%s3 + $0x44] sm:$0xf]
      %v1063 = vld [vmem:[%s3 + $0x48] sm:$0xf]
      %v1064 = vld [vmem:[%s3 + $0x4c] sm:$0xf]
      %v1065 = vld [vmem:[%s3 + $0x50] sm:$0xf]
      %v1066 = vld [vmem:[%s3 + $0x54] sm:$0xf]
      %v1067 = vld [vmem:[%s3 + $0x58] sm:$0xf]
      %v1068 = vld [vmem:[%s3 + $0x5c] sm:$0xf]
      %v1069 = vld [vmem:[%s3 + $0x60] sm:$0xf]
      %v1070 = vld [vmem:[%s3 + $0x64] sm:$0xf]
      %v1071 = vld [vmem:[%s3 + $0x68] sm:$0xf]
      %v1072 = vld [vmem:[%s3 + $0x6c] sm:$0xf]
      %v1073 = vld [vmem:[%s3 + $0x70] sm:$0xf]
      %v1074 = vld [vmem:[%s3 + $0x74] sm:$0xf]
      %v1075 = vld [vmem:[%s3 + $0x78] sm:$0xf]
      %v1076 = vld [vmem:[%s3 + $0x7c] sm:$0xf]
      %v1077 = vld [vmem:[%s3 + $0x80] sm:$0xf]
      %v1078 = vld [vmem:[%s3 + $0x84] sm:$0xf]
      %v1079 = vld [vmem:[%s3 + $0x88] sm:$0xf]
      %v1080 = vld [vmem:[%s3 + $0x8c] sm:$0xf]
      %v1081 = vld [vmem:[%s3 + $0x90] sm:$0xf]
      %v1082 = vld [vmem:[%s3 + $0x94] sm:$0xf]
      %v1083 = vld [vmem:[%s3 + $0x98] sm:$0xf]
      %v1084 = vld [vmem:[%s3 + $0x9c] sm:$0xf]
      %v1085 = vld [vmem:[%s3 + $0xa0] sm:$0xf]
      %v1086 = vld [vmem:[%s3 + $0xa4] sm:$0xf]
      %v1087 = vld [vmem:[%s3 + $0xa8] sm:$0xf]
      %v1088 = vld [vmem:[%s3 + $0xac] sm:$0xf]
      %v1089 = vld [vmem:[%s3 + $0xb0] sm:$0xf]
      %v1090 = vld [vmem:[%s3 + $0xb4] sm:$0xf]
      %v1091 = vld [vmem:[%s3 + $0xb8] sm:$0xf]
      %v1092 = vld [vmem:[%s3 + $0xbc] sm:$0xf]
      %v1093 = vld [vmem:[%s3 + $0xc0] sm:$0xf]
      %v1094 = vld [vmem:[%s3 + $0xc4] sm:$0xf]
      %v1095 = vld [vmem:[%s3 + $0xc8] sm:$0xf]
      %v1096 = vld [vmem:[%s3 + $0xcc] sm:$0xf]
      %v1097 = vld [vmem:[%s3 + $0xd0] sm:$0xf]
      %v1098 = vld [vmem:[%s3 + $0xd4] sm:$0xf]
      %v1099 = vld [vmem:[%s3 + $0xd8] sm:$0xf]
      %v1100 = vld [vmem:[%s3 + $0xdc] sm:$0xf]
      %v1101 = vld [vmem:[%s3 + $0xe0] sm:$0xf]
      %v1102 = vld [vmem:[%s3 + $0xe4] sm:$0xf]
      %v1103 = vld [vmem:[%s3 + $0xe8] sm:$0xf]
      %v1104 = vld [vmem:[%s3 + $0xec] sm:$0xf]
      %v1105 = vld [vmem:[%s3 + $0xf0] sm:$0xf]
      %v1106 = vld [vmem:[%s3 + $0xf4] sm:$0xf]
      %v1107 = vld [vmem:[%s3 + $0xf8] sm:$0xf]
      %v1108 = vld [vmem:[%s3 + $0xfc] sm:$0xf]
      %v1109 = vld [vmem:[%s3 + $0x100] sm:$0xf]
      %v1110 = vld [vmem:[%s3 + $0x104] sm:$0xf]
      %v1111 = vld [vmem:[%s3 + $0x108] sm:$0xf]
      %v1112 = vld [vmem:[%s3 + $0x10c] sm:$0xf]
      %v1113 = vld [vmem:[%s3 + $0x110] sm:$0xf]
      %v1114 = vld [vmem:[%s3 + $0x114] sm:$0xf]
      %v1115 = vld [vmem:[%s3 + $0x118] sm:$0xf]
      %v1116 = vld [vmem:[%s3 + $0x11c] sm:$0xf]
      %v1117 = vld [vmem:[%s3 + $0x120] sm:$0xf]
      %v1118 = vld [vmem:[%s3 + $0x124] sm:$0xf]
      %v1119 = vld [vmem:[%s3 + $0x128] sm:$0xf]
      %v1120 = vld [vmem:[%s3 + $0x12c] sm:$0xf]
      %v1121 = vld [vmem:[%s3 + $0x130] sm:$0xf]
      %v1122 = vld [vmem:[%s3 + $0x134] sm:$0xf]
      %v1123 = vld [vmem:[%s3 + $0x138] sm:$0xf]
      %v1124 = vld [vmem:[%s3 + $0x13c] sm:$0xf]
      %v1125 = vld [vmem:[%s3 + $0x140] sm:$0xf]
      %v1126 = vld [vmem:[%s3 + $0x144] sm:$0xf]
      %v1127 = vld [vmem:[%s3 + $0x148] sm:$0xf]
      %v1128 = vld [vmem:[%s3 + $0x14c] sm:$0xf]
      %v1129 = vld [vmem:[%s3 + $0x150] sm:$0xf]
      %v1130 = vld [vmem:[%s3 + $0x154] sm:$0xf]
      %v1131 = vld [vmem:[%s3 + $0x158] sm:$0xf]
      %v1132 = vld [vmem:[%s3 + $0x15c] sm:$0xf]
      %v1133 = vld [vmem:[%s3 + $0x160] sm:$0xf]
      %v1134 = vld [vmem:[%s3 + $0x164] sm:$0xf]
      %v1135 = vld [vmem:[%s3 + $0x168] sm:$0xf]
      %v1136 = vld [vmem:[%s3 + $0x16c] sm:$0xf]
      %v1137 = vld [vmem:[%s3 + $0x170] sm:$0xf]
      %v1138 = vld [vmem:[%s3 + $0x174] sm:$0xf]
      %v1139 = vld [vmem:[%s3 + $0x178] sm:$0xf]
      %v1140 = vld [vmem:[%s3 + $0x17c] sm:$0xf]
      %v1141 = vld [vmem:[%s3 + $0x180] sm:$0xf]
      %v1142 = vld [vmem:[%s3 + $0x184] sm:$0xf]
      %v1143 = vld [vmem:[%s3 + $0x188] sm:$0xf]
      %v1144 = vld [vmem:[%s3 + $0x18c] sm:$0xf]
      %v1145 = vld [vmem:[%s3 + $0x190] sm:$0xf]
      %v1146 = vld [vmem:[%s3 + $0x194] sm:$0xf]
      %v1147 = vld [vmem:[%s3 + $0x198] sm:$0xf]
      %v1148 = vld [vmem:[%s3 + $0x19c] sm:$0xf]
      %v1149 = vld [vmem:[%s3 + $0x1a0] sm:$0xf]
      %v1150 = vld [vmem:[%s3 + $0x1a4] sm:$0xf]
      %v1151 = vld [vmem:[%s3 + $0x1a8] sm:$0xf]
      %v1152 = vld [vmem:[%s3 + $0x1ac] sm:$0xf]
      %v1153 = vld [vmem:[%s3 + $0x1b0] sm:$0xf]
      %v1154 = vld [vmem:[%s3 + $0x1b4] sm:$0xf]
      %v1155 = vld [vmem:[%s3 + $0x1b8] sm:$0xf]
      %v1156 = vld [vmem:[%s3 + $0x1bc] sm:$0xf]
      %v1157 = vld [vmem:[%s3 + $0x1c0] sm:$0xf]
      %v1158 = vld [vmem:[%s3 + $0x1c4] sm:$0xf]
      %v1159 = vld [vmem:[%s3 + $0x1c8] sm:$0xf]
      %v1160 = vld [vmem:[%s3 + $0x1cc] sm:$0xf]
      %v1161 = vld [vmem:[%s3 + $0x1d0] sm:$0xf]
      %v1162 = vld [vmem:[%s3 + $0x1d4] sm:$0xf]
      %v1163 = vld [vmem:[%s3 + $0x1d8] sm:$0xf]
      %v1164 = vld [vmem:[%s3 + $0x1dc] sm:$0xf]
      %v1165 = vld [vmem:[%s3 + $0x1e0] sm:$0xf]
      %v1166 = vld [vmem:[%s3 + $0x1e4] sm:$0xf]
      %v1167 = vld [vmem:[%s3 + $0x1e8] sm:$0xf]
      %v1168 = vld [vmem:[%s3 + $0x1ec] sm:$0xf]
      %v1169 = vld [vmem:[%s3 + $0x1f0] sm:$0xf]
      %v1170 = vld [vmem:[%s3 + $0x1f4] sm:$0xf]
      %v1171 = vld [vmem:[%s3 + $0x1f8] sm:$0xf]
      %v1172 = vld [vmem:[%s3 + $0x1fc] sm:$0xf]
      %v1173 = vld [vmem:[%s3 + $0x200] sm:$0xf]
      %v1174 = vld [vmem:[%s3 + $0x204] sm:$0xf]
      %v1175 = vld [vmem:[%s3 + $0x208] sm:$0xf]
      %v1176 = vld [vmem:[%s3 + $0x20c] sm:$0xf]
      %v1177 = vld [vmem:[%s3 + $0x210] sm:$0xf]
      %v1178 = vld [vmem:[%s3 + $0x214] sm:$0xf]
      %v1179 = vld [vmem:[%s3 + $0x218] sm:$0xf]
      %v1180 = vld [vmem:[%s3 + $0x21c] sm:$0xf]
      %v1181 = vld [vmem:[%s3 + $0x220] sm:$0xf]
      %v1182 = vld [vmem:[%s3 + $0x224] sm:$0xf]
      %v1183 = vld [vmem:[%s3 + $0x228] sm:$0xf]
      %v1184 = vld [vmem:[%s3 + $0x22c] sm:$0xf]
      %v1185 = vld [vmem:[%s3 + $0x230] sm:$0xf]
      %v1186 = vld [vmem:[%s3 + $0x234] sm:$0xf]
      %v1187 = vld [vmem:[%s3 + $0x238] sm:$0xf]
      %v1188 = vld [vmem:[%s3 + $0x23c] sm:$0xf]
      %v1189 = vld [vmem:[%s4] sm:$0x1]
      %v1191 = vperm.slane %v1189, 0
      %v1337 = vunpack.c.l.b16 %v1045
      %v1338 = vunpack.c.l.b16 %v1046
      %v1339 = vunpack.c.l.b16 %v1047
      %v1340 = vunpack.c.l.b16 %v1048
      %v1341 = vunpack.c.l.b16 %v1049
      %v1342 = vunpack.c.l.b16 %v1050
      %v1343 = vunpack.c.l.b16 %v1051
      %v1344 = vunpack.c.l.b16 %v1052
      %v1345 = vunpack.c.l.b16 %v1053
      %v1346 = vunpack.c.l.b16 %v1054
      %v1347 = vunpack.c.l.b16 %v1055
      %v1348 = vunpack.c.l.b16 %v1056
      %v1349 = vunpack.c.l.b16 %v1057
      %v1350 = vunpack.c.l.b16 %v1058
      %v1351 = vunpack.c.l.b16 %v1059
      %v1352 = vunpack.c.l.b16 %v1060
      %v1353 = vunpack.c.l.b16 %v1061
      %v1354 = vunpack.c.l.b16 %v1062
      %v1355 = vunpack.c.l.b16 %v1063
      %v1356 = vunpack.c.l.b16 %v1064
      %v1357 = vunpack.c.l.b16 %v1065
      %v1358 = vunpack.c.l.b16 %v1066
      %v1359 = vunpack.c.l.b16 %v1067
      %v1360 = vunpack.c.l.b16 %v1068
      %v1361 = vunpack.c.l.b16 %v1069
      %v1362 = vunpack.c.l.b16 %v1070
      %v1363 = vunpack.c.l.b16 %v1071
      %v1364 = vunpack.c.l.b16 %v1072
      %v1365 = vunpack.c.l.b16 %v1073
      %v1366 = vunpack.c.l.b16 %v1074
      %v1367 = vunpack.c.l.b16 %v1075
      %v1368 = vunpack.c.l.b16 %v1076
      %v1369 = vunpack.c.l.b16 %v1077
      %v1370 = vunpack.c.l.b16 %v1078
      %v1371 = vunpack.c.l.b16 %v1079
      %v1372 = vunpack.c.l.b16 %v1080
      %v1373 = vunpack.c.l.b16 %v1081
      %v1374 = vunpack.c.l.b16 %v1082
      %v1375 = vunpack.c.l.b16 %v1083
      %v1376 = vunpack.c.l.b16 %v1084
      %v1377 = vunpack.c.l.b16 %v1085
      %v1378 = vunpack.c.l.b16 %v1086
      %v1379 = vunpack.c.l.b16 %v1087
      %v1380 = vunpack.c.l.b16 %v1088
      %v1381 = vunpack.c.l.b16 %v1089
      %v1382 = vunpack.c.l.b16 %v1090
      %v1383 = vunpack.c.l.b16 %v1091
      %v1384 = vunpack.c.l.b16 %v1092
      %v1385 = vunpack.c.l.b16 %v1093
      %v1386 = vunpack.c.l.b16 %v1094
      %v1387 = vunpack.c.l.b16 %v1095
      %v1388 = vunpack.c.l.b16 %v1096
      %v1389 = vunpack.c.l.b16 %v1097
      %v1390 = vunpack.c.l.b16 %v1098
      %v1391 = vunpack.c.l.b16 %v1099
      %v1392 = vunpack.c.l.b16 %v1100
      %v1393 = vunpack.c.l.b16 %v1101
      %v1394 = vunpack.c.l.b16 %v1102
      %v1395 = vunpack.c.l.b16 %v1103
      %v1396 = vunpack.c.l.b16 %v1104
      %v1397 = vunpack.c.l.b16 %v1105
      %v1398 = vunpack.c.l.b16 %v1106
      %v1399 = vunpack.c.l.b16 %v1107
      %v1400 = vunpack.c.l.b16 %v1108
      %v1401 = vunpack.c.l.b16 %v1109
      %v1402 = vunpack.c.l.b16 %v1110
      %v1403 = vunpack.c.l.b16 %v1111
      %v1404 = vunpack.c.l.b16 %v1112
      %v1405 = vunpack.c.l.b16 %v1113
      %v1406 = vunpack.c.l.b16 %v1114
      %v1407 = vunpack.c.l.b16 %v1115
      %v1408 = vunpack.c.l.b16 %v1116
      %v1409 = vunpack.c.l.b16 %v1117
      %v1410 = vunpack.c.l.b16 %v1118
      %v1411 = vunpack.c.l.b16 %v1119
      %v1412 = vunpack.c.l.b16 %v1120
      %v1413 = vunpack.c.l.b16 %v1121
      %v1414 = vunpack.c.l.b16 %v1122
      %v1415 = vunpack.c.l.b16 %v1123
      %v1416 = vunpack.c.l.b16 %v1124
      %v1417 = vunpack.c.l.b16 %v1125
      %v1418 = vunpack.c.l.b16 %v1126
      %v1419 = vunpack.c.l.b16 %v1127
      %v1420 = vunpack.c.l.b16 %v1128
      %v1421 = vunpack.c.l.b16 %v1129
      %v1422 = vunpack.c.l.b16 %v1130
      %v1423 = vunpack.c.l.b16 %v1131
      %v1424 = vunpack.c.l.b16 %v1132
      %v1425 = vunpack.c.l.b16 %v1133
      %v1426 = vunpack.c.l.b16 %v1134
      %v1427 = vunpack.c.l.b16 %v1135
      %v1428 = vunpack.c.l.b16 %v1136
      %v1429 = vunpack.c.l.b16 %v1137
      %v1430 = vunpack.c.l.b16 %v1138
      %v1431 = vunpack.c.l.b16 %v1139
      %v1432 = vunpack.c.l.b16 %v1140
      %v1433 = vunpack.c.l.b16 %v1141
      %v1434 = vunpack.c.l.b16 %v1142
      %v1435 = vunpack.c.l.b16 %v1143
      %v1436 = vunpack.c.l.b16 %v1144
      %v1437 = vunpack.c.l.b16 %v1145
      %v1438 = vunpack.c.l.b16 %v1146
      %v1439 = vunpack.c.l.b16 %v1147
      %v1440 = vunpack.c.l.b16 %v1148
      %v1441 = vunpack.c.l.b16 %v1149
      %v1442 = vunpack.c.l.b16 %v1150
      %v1443 = vunpack.c.l.b16 %v1151
      %v1444 = vunpack.c.l.b16 %v1152
      %v1445 = vunpack.c.l.b16 %v1153
      %v1446 = vunpack.c.l.b16 %v1154
      %v1447 = vunpack.c.l.b16 %v1155
      %v1448 = vunpack.c.l.b16 %v1156
      %v1449 = vunpack.c.l.b16 %v1157
      %v1450 = vunpack.c.l.b16 %v1158
      %v1451 = vunpack.c.l.b16 %v1159
      %v1452 = vunpack.c.l.b16 %v1160
      %v1453 = vunpack.c.l.b16 %v1161
      %v1454 = vunpack.c.l.b16 %v1162
      %v1455 = vunpack.c.l.b16 %v1163
      %v1456 = vunpack.c.l.b16 %v1164
      %v1457 = vunpack.c.l.b16 %v1165
      %v1458 = vunpack.c.l.b16 %v1166
      %v1459 = vunpack.c.l.b16 %v1167
      %v1460 = vunpack.c.l.b16 %v1168
      %v1461 = vunpack.c.l.b16 %v1169
      %v1462 = vunpack.c.l.b16 %v1170
      %v1463 = vunpack.c.l.b16 %v1171
      %v1464 = vunpack.c.l.b16 %v1172
      %v1465 = vunpack.c.l.b16 %v1173
      %v1466 = vunpack.c.l.b16 %v1174
      %v1467 = vunpack.c.l.b16 %v1175
      %v1468 = vunpack.c.l.b16 %v1176
      %v1469 = vunpack.c.l.b16 %v1177
      %v1470 = vunpack.c.l.b16 %v1178
      %v1471 = vunpack.c.l.b16 %v1179
      %v1472 = vunpack.c.l.b16 %v1180
      %v1473 = vunpack.c.l.b16 %v1181
      %v1474 = vunpack.c.l.b16 %v1182
      %v1475 = vunpack.c.l.b16 %v1183
      %v1476 = vunpack.c.l.b16 %v1184
      %v1477 = vunpack.c.l.b16 %v1185
      %v1478 = vunpack.c.l.b16 %v1186
      %v1479 = vunpack.c.l.b16 %v1187
      %v1480 = vunpack.c.l.b16 %v1188
      %v1481 = vpack.c.b16 %v1338, %v1337
      %v1482 = vpack.c.b16 %v1340, %v1339
      %v1483 = vpack.c.b16 %v1342, %v1341
      %v1484 = vpack.c.b16 %v1344, %v1343
      %v1485 = vpack.c.b16 %v1346, %v1345
      %v1486 = vpack.c.b16 %v1348, %v1347
      %v1487 = vpack.c.b16 %v1350, %v1349
      %v1488 = vpack.c.b16 %v1352, %v1351
      %v1489 = vpack.c.b16 %v1354, %v1353
      %v1490 = vpack.c.b16 %v1356, %v1355
      %v1491 = vpack.c.b16 %v1358, %v1357
      %v1492 = vpack.c.b16 %v1360, %v1359
      %v1493 = vpack.c.b16 %v1362, %v1361
      %v1494 = vpack.c.b16 %v1364, %v1363
      %v1495 = vpack.c.b16 %v1366, %v1365
      %v1496 = vpack.c.b16 %v1368, %v1367
      %v1497 = vpack.c.b16 %v1370, %v1369
      %v1498 = vpack.c.b16 %v1372, %v1371
      %v1499 = vpack.c.b16 %v1374, %v1373
      %v1500 = vpack.c.b16 %v1376, %v1375
      %v1501 = vpack.c.b16 %v1378, %v1377
      %v1502 = vpack.c.b16 %v1380, %v1379
      %v1503 = vpack.c.b16 %v1382, %v1381
      %v1504 = vpack.c.b16 %v1384, %v1383
      %v1505 = vpack.c.b16 %v1386, %v1385
      %v1506 = vpack.c.b16 %v1388, %v1387
      %v1507 = vpack.c.b16 %v1390, %v1389
      %v1508 = vpack.c.b16 %v1392, %v1391
      %v1509 = vpack.c.b16 %v1394, %v1393
      %v1510 = vpack.c.b16 %v1396, %v1395
      %v1511 = vpack.c.b16 %v1398, %v1397
      %v1512 = vpack.c.b16 %v1400, %v1399
      %v1513 = vpack.c.b16 %v1402, %v1401
      %v1514 = vpack.c.b16 %v1404, %v1403
      %v1515 = vpack.c.b16 %v1406, %v1405
      %v1516 = vpack.c.b16 %v1408, %v1407
      %v1517 = vpack.c.b16 %v1410, %v1409
      %v1518 = vpack.c.b16 %v1412, %v1411
      %v1519 = vpack.c.b16 %v1414, %v1413
      %v1520 = vpack.c.b16 %v1416, %v1415
      %v1521 = vpack.c.b16 %v1418, %v1417
      %v1522 = vpack.c.b16 %v1420, %v1419
      %v1523 = vpack.c.b16 %v1422, %v1421
      %v1524 = vpack.c.b16 %v1424, %v1423
      %v1525 = vpack.c.b16 %v1426, %v1425
      %v1526 = vpack.c.b16 %v1428, %v1427
      %v1527 = vpack.c.b16 %v1430, %v1429
      %v1528 = vpack.c.b16 %v1432, %v1431
      %v1529 = vpack.c.b16 %v1434, %v1433
      %v1530 = vpack.c.b16 %v1436, %v1435
      %v1531 = vpack.c.b16 %v1438, %v1437
      %v1532 = vpack.c.b16 %v1440, %v1439
      %v1533 = vpack.c.b16 %v1442, %v1441
      %v1534 = vpack.c.b16 %v1444, %v1443
      %v1535 = vpack.c.b16 %v1446, %v1445
      %v1536 = vpack.c.b16 %v1448, %v1447
      %v1537 = vpack.c.b16 %v1450, %v1449
      %v1538 = vpack.c.b16 %v1452, %v1451
      %v1539 = vpack.c.b16 %v1454, %v1453
      %v1540 = vpack.c.b16 %v1456, %v1455
      %v1541 = vpack.c.b16 %v1458, %v1457
      %v1542 = vpack.c.b16 %v1460, %v1459
      %v1543 = vpack.c.b16 %v1462, %v1461
      %v1544 = vpack.c.b16 %v1464, %v1463
      %v1545 = vpack.c.b16 %v1466, %v1465
      %v1546 = vpack.c.b16 %v1468, %v1467
      %v1547 = vpack.c.b16 %v1470, %v1469
      %v1548 = vpack.c.b16 %v1472, %v1471
      %v1549 = vpack.c.b16 %v1474, %v1473
      %v1550 = vpack.c.b16 %v1476, %v1475
      %v1551 = vpack.c.b16 %v1478, %v1477
      %v1552 = vpack.c.b16 %v1480, %v1479
      %1625 = vmatpush.bf16.msra.mxu0 %v1488
      %1626 = vmatpush.bf16.msra.mxu0 %v1487
      %1627 = vmatpush.bf16.msra.mxu0 %v1486
      %1628 = vmatpush.bf16.msra.mxu0 %v1485
      %1629 = vmatpush.bf16.msra.mxu0 %v1484
      %1630 = vmatpush.bf16.msra.mxu0 %v1483
      %1631 = vmatpush.bf16.msra.mxu0 %v1482
      %1632 = vmatpush.bf16.msra.mxu0 %v1481
      %1633 = vmatmul.bf16.gmra.mxu0 %v991
      %v1634 = vpop.f32.mrf.mxu0
      %v1635 = vadd.f32 %v1191, %v1634
      %v1636 = vpop.f32.mrf.mxu0
      %v1637 = vadd.f32 %v1191, %v1636
      %1638 = vmatmul.bf16.gmra.mxu0 %v994
      %v1639 = vpop.f32.mrf.mxu0
      %v1640 = vadd.f32 %v1191, %v1639
      %v1641 = vpop.f32.mrf.mxu0
      %v1642 = vadd.f32 %v1191, %v1641
      %1643 = vmatmul.bf16.gmra.mxu0 %v997
      %v1644 = vpop.f32.mrf.mxu0
      %v1645 = vadd.f32 %v1191, %v1644
      %v1646 = vpop.f32.mrf.mxu0
      %v1647 = vadd.f32 %v1191, %v1646
      %1648 = vmatmul.bf16.gmra.mxu0 %v1000
      %v1649 = vpop.f32.mrf.mxu0
      %v1650 = vadd.f32 %v1191, %v1649
      %v1651 = vpop.f32.mrf.mxu0
      %v1652 = vadd.f32 %v1191, %v1651
      %1653 = vmatmul.bf16.gmra.mxu0 %v1003
      %v1654 = vpop.f32.mrf.mxu0
      %v1655 = vadd.f32 %v1191, %v1654
      %v1656 = vpop.f32.mrf.mxu0
      %v1657 = vadd.f32 %v1191, %v1656
      %1658 = vmatmul.bf16.gmra.mxu0 %v1006
      %v1659 = vpop.f32.mrf.mxu0
      %v1660 = vadd.f32 %v1191, %v1659
      %v1661 = vpop.f32.mrf.mxu0
      %v1662 = vadd.f32 %v1191, %v1661
      %1663 = vmatmul.bf16.gmra.mxu0 %v1009
      %v1664 = vpop.f32.mrf.mxu0
      %v1665 = vadd.f32 %v1191, %v1664
      %v1666 = vpop.f32.mrf.mxu0
      %v1667 = vadd.f32 %v1191, %v1666
      %1668 = vmatmul.bf16.gmra.mxu0 %v1012
      %v1669 = vpop.f32.mrf.mxu0
      %v1670 = vadd.f32 %v1191, %v1669
      %v1671 = vpop.f32.mrf.mxu0
      %v1672 = vadd.f32 %v1191, %v1671
      %1673 = vmatmul.bf16.gmra.mxu0 %v1015
      %v1674 = vpop.f32.mrf.mxu0
      %v1675 = vadd.f32 %v1191, %v1674
      %v1676 = vpop.f32.mrf.mxu0
      %v1677 = vadd.f32 %v1191, %v1676
      %1678 = vmatmul.bf16.gmra.mxu0 %v1018
      %v1679 = vpop.f32.mrf.mxu0
      %v1680 = vadd.f32 %v1191, %v1679
      %v1681 = vpop.f32.mrf.mxu0
      %v1682 = vadd.f32 %v1191, %v1681
      %1683 = vmatmul.bf16.gmra.mxu0 %v1021
      %v1684 = vpop.f32.mrf.mxu0
      %v1685 = vadd.f32 %v1191, %v1684
      %v1686 = vpop.f32.mrf.mxu0
      %v1687 = vadd.f32 %v1191, %v1686
      %1688 = vmatmul.bf16.gmra.mxu0 %v1024
      %v1689 = vpop.f32.mrf.mxu0
      %v1690 = vadd.f32 %v1191, %v1689
      %v1691 = vpop.f32.mrf.mxu0
      %v1692 = vadd.f32 %v1191, %v1691
      %1693 = vmatmul.bf16.gmra.mxu0 %v1027
      %v1694 = vpop.f32.mrf.mxu0
      %v1695 = vadd.f32 %v1191, %v1694
      %v1696 = vpop.f32.mrf.mxu0
      %v1697 = vadd.f32 %v1191, %v1696
      %1698 = vmatmul.bf16.gmra.mxu0 %v1030
      %v1699 = vpop.f32.mrf.mxu0
      %v1700 = vadd.f32 %v1191, %v1699
      %v1701 = vpop.f32.mrf.mxu0
      %v1702 = vadd.f32 %v1191, %v1701
      %1703 = vmatmul.bf16.gmra.mxu0 %v1033
      %v1704 = vpop.f32.mrf.mxu0
      %v1705 = vadd.f32 %v1191, %v1704
      %v1706 = vpop.f32.mrf.mxu0
      %v1707 = vadd.f32 %v1191, %v1706
      %1708 = vmatmul.bf16.gmra.mxu0 %v1036
      %v1709 = vpop.f32.mrf.mxu0
      %v1710 = vadd.f32 %v1191, %v1709
      %v1711 = vpop.f32.mrf.mxu0
      %v1712 = vadd.f32 %v1191, %v1711
      %1713 = vdwg.mxu0
      %1714 = vmatpush.bf16.msra.mxu0 %v1496
      %1715 = vmatpush.bf16.msra.mxu0 %v1495
      %1716 = vmatpush.bf16.msra.mxu0 %v1494
      %1717 = vmatpush.bf16.msra.mxu0 %v1493
      %1718 = vmatpush.bf16.msra.mxu0 %v1492
      %1719 = vmatpush.bf16.msra.mxu0 %v1491
      %1720 = vmatpush.bf16.msra.mxu0 %v1490
      %1721 = vmatpush.bf16.msra.mxu0 %v1489
      %1722 = vmatmul.bf16.gmra.mxu0 %v992
      %v1723 = vpop.f32.mrf.mxu0
      %v1724 = vadd.f32 %v1635, %v1723
      %v1725 = vpop.f32.mrf.mxu0
      %v1726 = vadd.f32 %v1637, %v1725
      %1727 = vmatmul.bf16.gmra.mxu0 %v995
      %v1728 = vpop.f32.mrf.mxu0
      %v1729 = vadd.f32 %v1640, %v1728
      %v1730 = vpop.f32.mrf.mxu0
      %v1731 = vadd.f32 %v1642, %v1730
      %1732 = vmatmul.bf16.gmra.mxu0 %v998
      %v1733 = vpop.f32.mrf.mxu0
      %v1734 = vadd.f32 %v1645, %v1733
      %v1735 = vpop.f32.mrf.mxu0
      %v1736 = vadd.f32 %v1647, %v1735
      %1737 = vmatmul.bf16.gmra.mxu0 %v1001
      %v1738 = vpop.f32.mrf.mxu0
      %v1739 = vadd.f32 %v1650, %v1738
      %v1740 = vpop.f32.mrf.mxu0
      %v1741 = vadd.f32 %v1652, %v1740
      %1742 = vmatmul.bf16.gmra.mxu0 %v1004
      %v1743 = vpop.f32.mrf.mxu0
      %v1744 = vadd.f32 %v1655, %v1743
      %v1745 = vpop.f32.mrf.mxu0
      %v1746 = vadd.f32 %v1657, %v1745
      %1747 = vmatmul.bf16.gmra.mxu0 %v1007
      %v1748 = vpop.f32.mrf.mxu0
      %v1749 = vadd.f32 %v1660, %v1748
      %v1750 = vpop.f32.mrf.mxu0
      %v1751 = vadd.f32 %v1662, %v1750
      %1752 = vmatmul.bf16.gmra.mxu0 %v1010
      %v1753 = vpop.f32.mrf.mxu0
      %v1754 = vadd.f32 %v1665, %v1753
      %v1755 = vpop.f32.mrf.mxu0
      %v1756 = vadd.f32 %v1667, %v1755
      %1757 = vmatmul.bf16.gmra.mxu0 %v1013
      %v1758 = vpop.f32.mrf.mxu0
      %v1759 = vadd.f32 %v1670, %v1758
      %v1760 = vpop.f32.mrf.mxu0
      %v1761 = vadd.f32 %v1672, %v1760
      %1762 = vmatmul.bf16.gmra.mxu0 %v1016
      %v1763 = vpop.f32.mrf.mxu0
      %v1764 = vadd.f32 %v1675, %v1763
      %v1765 = vpop.f32.mrf.mxu0
      %v1766 = vadd.f32 %v1677, %v1765
      %1767 = vmatmul.bf16.gmra.mxu0 %v1019
      %v1768 = vpop.f32.mrf.mxu0
      %v1769 = vadd.f32 %v1680, %v1768
      %v1770 = vpop.f32.mrf.mxu0
      %v1771 = vadd.f32 %v1682, %v1770
      %1772 = vmatmul.bf16.gmra.mxu0 %v1022
      %v1773 = vpop.f32.mrf.mxu0
      %v1774 = vadd.f32 %v1685, %v1773
      %v1775 = vpop.f32.mrf.mxu0
      %v1776 = vadd.f32 %v1687, %v1775
      %1777 = vmatmul.bf16.gmra.mxu0 %v1025
      %v1778 = vpop.f32.mrf.mxu0
      %v1779 = vadd.f32 %v1690, %v1778
      %v1780 = vpop.f32.mrf.mxu0
      %v1781 = vadd.f32 %v1692, %v1780
      %1782 = vmatmul.bf16.gmra.mxu0 %v1028
      %v1783 = vpop.f32.mrf.mxu0
      %v1784 = vadd.f32 %v1695, %v1783
      %v1785 = vpop.f32.mrf.mxu0
      %v1786 = vadd.f32 %v1697, %v1785
      %1787 = vmatmul.bf16.gmra.mxu0 %v1031
      %v1788 = vpop.f32.mrf.mxu0
      %v1789 = vadd.f32 %v1700, %v1788
      %v1790 = vpop.f32.mrf.mxu0
      %v1791 = vadd.f32 %v1702, %v1790
      %1792 = vmatmul.bf16.gmra.mxu0 %v1034
      %v1793 = vpop.f32.mrf.mxu0
      %v1794 = vadd.f32 %v1705, %v1793
      %v1795 = vpop.f32.mrf.mxu0
      %v1796 = vadd.f32 %v1707, %v1795
      %1797 = vmatmul.bf16.gmra.mxu0 %v1037
      %v1798 = vpop.f32.mrf.mxu0
      %v1799 = vadd.f32 %v1710, %v1798
      %v1800 = vpop.f32.mrf.mxu0
      %v1801 = vadd.f32 %v1712, %v1800
      %1802 = vdwg.mxu0
      %1803 = vmatpush.bf16.msra.mxu0 %v1504
      %1804 = vmatpush.bf16.msra.mxu0 %v1503
      %1805 = vmatpush.bf16.msra.mxu0 %v1502
      %1806 = vmatpush.bf16.msra.mxu0 %v1501
      %1807 = vmatpush.bf16.msra.mxu0 %v1500
      %1808 = vmatpush.bf16.msra.mxu0 %v1499
      %1809 = vmatpush.bf16.msra.mxu0 %v1498
      %1810 = vmatpush.bf16.msra.mxu0 %v1497
      %1811 = vmatmul.bf16.gmra.mxu0 %v993
      %v1812 = vpop.f32.mrf.mxu0
      %v1813 = vadd.f32 %v1724, %v1812
      %v1814 = vpop.f32.mrf.mxu0
      %v1815 = vadd.f32 %v1726, %v1814
      %1816 = vmatmul.bf16.gmra.mxu0 %v996
      %v1817 = vpop.f32.mrf.mxu0
      %v1818 = vadd.f32 %v1729, %v1817
      %v1819 = vpop.f32.mrf.mxu0
      %v1820 = vadd.f32 %v1731, %v1819
      %1821 = vmatmul.bf16.gmra.mxu0 %v999
      %v1822 = vpop.f32.mrf.mxu0
      %v1823 = vadd.f32 %v1734, %v1822
      %v1824 = vpop.f32.mrf.mxu0
      %v1825 = vadd.f32 %v1736, %v1824
      %1826 = vmatmul.bf16.gmra.mxu0 %v1002
      %v1827 = vpop.f32.mrf.mxu0
      %v1828 = vadd.f32 %v1739, %v1827
      %v1829 = vpop.f32.mrf.mxu0
      %v1830 = vadd.f32 %v1741, %v1829
      %1831 = vmatmul.bf16.gmra.mxu0 %v1005
      %v1832 = vpop.f32.mrf.mxu0
      %v1833 = vadd.f32 %v1744, %v1832
      %v1834 = vpop.f32.mrf.mxu0
      %v1835 = vadd.f32 %v1746, %v1834
      %1836 = vmatmul.bf16.gmra.mxu0 %v1008
      %v1837 = vpop.f32.mrf.mxu0
      %v1838 = vadd.f32 %v1749, %v1837
      %v1839 = vpop.f32.mrf.mxu0
      %v1840 = vadd.f32 %v1751, %v1839
      %1841 = vmatmul.bf16.gmra.mxu0 %v1011
      %v1842 = vpop.f32.mrf.mxu0
      %v1843 = vadd.f32 %v1754, %v1842
      %v1844 = vpop.f32.mrf.mxu0
      %v1845 = vadd.f32 %v1756, %v1844
      %1846 = vmatmul.bf16.gmra.mxu0 %v1014
      %v1847 = vpop.f32.mrf.mxu0
      %v1848 = vadd.f32 %v1759, %v1847
      %v1849 = vpop.f32.mrf.mxu0
      %v1850 = vadd.f32 %v1761, %v1849
      %1851 = vmatmul.bf16.gmra.mxu0 %v1017
      %v1852 = vpop.f32.mrf.mxu0
      %v1853 = vadd.f32 %v1764, %v1852
      %v1854 = vpop.f32.mrf.mxu0
      %v1855 = vadd.f32 %v1766, %v1854
      %1856 = vmatmul.bf16.gmra.mxu0 %v1020
      %v1857 = vpop.f32.mrf.mxu0
      %v1858 = vadd.f32 %v1769, %v1857
      %v1859 = vpop.f32.mrf.mxu0
      %v1860 = vadd.f32 %v1771, %v1859
      %1861 = vmatmul.bf16.gmra.mxu0 %v1023
      %v1862 = vpop.f32.mrf.mxu0
      %v1863 = vadd.f32 %v1774, %v1862
      %v1864 = vpop.f32.mrf.mxu0
      %v1865 = vadd.f32 %v1776, %v1864
      %1866 = vmatmul.bf16.gmra.mxu0 %v1026
      %v1867 = vpop.f32.mrf.mxu0
      %v1868 = vadd.f32 %v1779, %v1867
      %v1869 = vpop.f32.mrf.mxu0
      %v1870 = vadd.f32 %v1781, %v1869
      %1871 = vmatmul.bf16.gmra.mxu0 %v1029
      %v1872 = vpop.f32.mrf.mxu0
      %v1873 = vadd.f32 %v1784, %v1872
      %v1874 = vpop.f32.mrf.mxu0
      %v1875 = vadd.f32 %v1786, %v1874
      %1876 = vmatmul.bf16.gmra.mxu0 %v1032
      %v1877 = vpop.f32.mrf.mxu0
      %v1878 = vadd.f32 %v1789, %v1877
      %v1879 = vpop.f32.mrf.mxu0
      %v1880 = vadd.f32 %v1791, %v1879
      %1881 = vmatmul.bf16.gmra.mxu0 %v1035
      %v1882 = vpop.f32.mrf.mxu0
      %v1883 = vadd.f32 %v1794, %v1882
      %v1884 = vpop.f32.mrf.mxu0
      %v1885 = vadd.f32 %v1796, %v1884
      %1886 = vmatmul.bf16.gmra.mxu0 %v1038
      %v1887 = vpop.f32.mrf.mxu0
      %v1888 = vadd.f32 %v1799, %v1887
      %v1889 = vpop.f32.mrf.mxu0
      %v1890 = vadd.f32 %v1801, %v1889
      %1891 = vdwg.mxu0
      %1892 = vmatpush.bf16.msra.mxu0 %v1512
      %1893 = vmatpush.bf16.msra.mxu0 %v1511
      %1894 = vmatpush.bf16.msra.mxu0 %v1510
      %1895 = vmatpush.bf16.msra.mxu0 %v1509
      %1896 = vmatpush.bf16.msra.mxu0 %v1508
      %1897 = vmatpush.bf16.msra.mxu0 %v1507
      %1898 = vmatpush.bf16.msra.mxu0 %v1506
      %1899 = vmatpush.bf16.msra.mxu0 %v1505
      %1900 = vmatmul.bf16.gmra.mxu0 %v994
      %v1901 = vpop.f32.mrf.mxu0
      %v1902 = vadd.f32 %v1813, %v1901
      %v1903 = vpop.f32.mrf.mxu0
      %v1904 = vadd.f32 %v1815, %v1903
      %1905 = vmatmul.bf16.gmra.mxu0 %v997
      %v1906 = vpop.f32.mrf.mxu0
      %v1907 = vadd.f32 %v1818, %v1906
      %v1908 = vpop.f32.mrf.mxu0
      %v1909 = vadd.f32 %v1820, %v1908
      %1910 = vmatmul.bf16.gmra.mxu0 %v1000
      %v1911 = vpop.f32.mrf.mxu0
      %v1912 = vadd.f32 %v1823, %v1911
      %v1913 = vpop.f32.mrf.mxu0
      %v1914 = vadd.f32 %v1825, %v1913
      %1915 = vmatmul.bf16.gmra.mxu0 %v1003
      %v1916 = vpop.f32.mrf.mxu0
      %v1917 = vadd.f32 %v1828, %v1916
      %v1918 = vpop.f32.mrf.mxu0
      %v1919 = vadd.f32 %v1830, %v1918
      %1920 = vmatmul.bf16.gmra.mxu0 %v1006
      %v1921 = vpop.f32.mrf.mxu0
      %v1922 = vadd.f32 %v1833, %v1921
      %v1923 = vpop.f32.mrf.mxu0
      %v1924 = vadd.f32 %v1835, %v1923
      %1925 = vmatmul.bf16.gmra.mxu0 %v1009
      %v1926 = vpop.f32.mrf.mxu0
      %v1927 = vadd.f32 %v1838, %v1926
      %v1928 = vpop.f32.mrf.mxu0
      %v1929 = vadd.f32 %v1840, %v1928
      %1930 = vmatmul.bf16.gmra.mxu0 %v1012
      %v1931 = vpop.f32.mrf.mxu0
      %v1932 = vadd.f32 %v1843, %v1931
      %v1933 = vpop.f32.mrf.mxu0
      %v1934 = vadd.f32 %v1845, %v1933
      %1935 = vmatmul.bf16.gmra.mxu0 %v1015
      %v1936 = vpop.f32.mrf.mxu0
      %v1937 = vadd.f32 %v1848, %v1936
      %v1938 = vpop.f32.mrf.mxu0
      %v1939 = vadd.f32 %v1850, %v1938
      %1940 = vmatmul.bf16.gmra.mxu0 %v1018
      %v1941 = vpop.f32.mrf.mxu0
      %v1942 = vadd.f32 %v1853, %v1941
      %v1943 = vpop.f32.mrf.mxu0
      %v1944 = vadd.f32 %v1855, %v1943
      %1945 = vmatmul.bf16.gmra.mxu0 %v1021
      %v1946 = vpop.f32.mrf.mxu0
      %v1947 = vadd.f32 %v1858, %v1946
      %v1948 = vpop.f32.mrf.mxu0
      %v1949 = vadd.f32 %v1860, %v1948
      %1950 = vmatmul.bf16.gmra.mxu0 %v1024
      %v1951 = vpop.f32.mrf.mxu0
      %v1952 = vadd.f32 %v1863, %v1951
      %v1953 = vpop.f32.mrf.mxu0
      %v1954 = vadd.f32 %v1865, %v1953
      %1955 = vmatmul.bf16.gmra.mxu0 %v1027
      %v1956 = vpop.f32.mrf.mxu0
      %v1957 = vadd.f32 %v1868, %v1956
      %v1958 = vpop.f32.mrf.mxu0
      %v1959 = vadd.f32 %v1870, %v1958
      %1960 = vmatmul.bf16.gmra.mxu0 %v1030
      %v1961 = vpop.f32.mrf.mxu0
      %v1962 = vadd.f32 %v1873, %v1961
      %v1963 = vpop.f32.mrf.mxu0
      %v1964 = vadd.f32 %v1875, %v1963
      %1965 = vmatmul.bf16.gmra.mxu0 %v1033
      %v1966 = vpop.f32.mrf.mxu0
      %v1967 = vadd.f32 %v1878, %v1966
      %v1968 = vpop.f32.mrf.mxu0
      %v1969 = vadd.f32 %v1880, %v1968
      %1970 = vmatmul.bf16.gmra.mxu0 %v1036
      %v1971 = vpop.f32.mrf.mxu0
      %v1972 = vadd.f32 %v1883, %v1971
      %v1973 = vpop.f32.mrf.mxu0
      %v1974 = vadd.f32 %v1885, %v1973
      %1975 = vmatmul.bf16.gmra.mxu0 %v1039
      %v1976 = vpop.f32.mrf.mxu0
      %v1977 = vadd.f32 %v1888, %v1976
      %v1978 = vpop.f32.mrf.mxu0
      %v1979 = vadd.f32 %v1890, %v1978
      %1980 = vdwg.mxu0
      %1981 = vmatpush.bf16.msra.mxu0 %v1520
      %1982 = vmatpush.bf16.msra.mxu0 %v1519
      %1983 = vmatpush.bf16.msra.mxu0 %v1518
      %1984 = vmatpush.bf16.msra.mxu0 %v1517
      %1985 = vmatpush.bf16.msra.mxu0 %v1516
      %1986 = vmatpush.bf16.msra.mxu0 %v1515
      %1987 = vmatpush.bf16.msra.mxu0 %v1514
      %1988 = vmatpush.bf16.msra.mxu0 %v1513
      %1989 = vmatmul.bf16.gmra.mxu0 %v995
      %v1990 = vpop.f32.mrf.mxu0
      %v1991 = vadd.f32 %v1902, %v1990
      %v1992 = vpop.f32.mrf.mxu0
      %v1993 = vadd.f32 %v1904, %v1992
      %1994 = vmatmul.bf16.gmra.mxu0 %v998
      %v1995 = vpop.f32.mrf.mxu0
      %v1996 = vadd.f32 %v1907, %v1995
      %v1997 = vpop.f32.mrf.mxu0
      %v1998 = vadd.f32 %v1909, %v1997
      %1999 = vmatmul.bf16.gmra.mxu0 %v1001
      %v2000 = vpop.f32.mrf.mxu0
      %v2001 = vadd.f32 %v1912, %v2000
      %v2002 = vpop.f32.mrf.mxu0
      %v2003 = vadd.f32 %v1914, %v2002
      %2004 = vmatmul.bf16.gmra.mxu0 %v1004
      %v2005 = vpop.f32.mrf.mxu0
      %v2006 = vadd.f32 %v1917, %v2005
      %v2007 = vpop.f32.mrf.mxu0
      %v2008 = vadd.f32 %v1919, %v2007
      %2009 = vmatmul.bf16.gmra.mxu0 %v1007
      %v2010 = vpop.f32.mrf.mxu0
      %v2011 = vadd.f32 %v1922, %v2010
      %v2012 = vpop.f32.mrf.mxu0
      %v2013 = vadd.f32 %v1924, %v2012
      %2014 = vmatmul.bf16.gmra.mxu0 %v1010
      %v2015 = vpop.f32.mrf.mxu0
      %v2016 = vadd.f32 %v1927, %v2015
      %v2017 = vpop.f32.mrf.mxu0
      %v2018 = vadd.f32 %v1929, %v2017
      %2019 = vmatmul.bf16.gmra.mxu0 %v1013
      %v2020 = vpop.f32.mrf.mxu0
      %v2021 = vadd.f32 %v1932, %v2020
      %v2022 = vpop.f32.mrf.mxu0
      %v2023 = vadd.f32 %v1934, %v2022
      %2024 = vmatmul.bf16.gmra.mxu0 %v1016
      %v2025 = vpop.f32.mrf.mxu0
      %v2026 = vadd.f32 %v1937, %v2025
      %v2027 = vpop.f32.mrf.mxu0
      %v2028 = vadd.f32 %v1939, %v2027
      %2029 = vmatmul.bf16.gmra.mxu0 %v1019
      %v2030 = vpop.f32.mrf.mxu0
      %v2031 = vadd.f32 %v1942, %v2030
      %v2032 = vpop.f32.mrf.mxu0
      %v2033 = vadd.f32 %v1944, %v2032
      %2034 = vmatmul.bf16.gmra.mxu0 %v1022
      %v2035 = vpop.f32.mrf.mxu0
      %v2036 = vadd.f32 %v1947, %v2035
      %v2037 = vpop.f32.mrf.mxu0
      %v2038 = vadd.f32 %v1949, %v2037
      %2039 = vmatmul.bf16.gmra.mxu0 %v1025
      %v2040 = vpop.f32.mrf.mxu0
      %v2041 = vadd.f32 %v1952, %v2040
      %v2042 = vpop.f32.mrf.mxu0
      %v2043 = vadd.f32 %v1954, %v2042
      %2044 = vmatmul.bf16.gmra.mxu0 %v1028
      %v2045 = vpop.f32.mrf.mxu0
      %v2046 = vadd.f32 %v1957, %v2045
      %v2047 = vpop.f32.mrf.mxu0
      %v2048 = vadd.f32 %v1959, %v2047
      %2049 = vmatmul.bf16.gmra.mxu0 %v1031
      %v2050 = vpop.f32.mrf.mxu0
      %v2051 = vadd.f32 %v1962, %v2050
      %v2052 = vpop.f32.mrf.mxu0
      %v2053 = vadd.f32 %v1964, %v2052
      %2054 = vmatmul.bf16.gmra.mxu0 %v1034
      %v2055 = vpop.f32.mrf.mxu0
      %v2056 = vadd.f32 %v1967, %v2055
      %v2057 = vpop.f32.mrf.mxu0
      %v2058 = vadd.f32 %v1969, %v2057
      %2059 = vmatmul.bf16.gmra.mxu0 %v1037
      %v2060 = vpop.f32.mrf.mxu0
      %v2061 = vadd.f32 %v1972, %v2060
      %v2062 = vpop.f32.mrf.mxu0
      %v2063 = vadd.f32 %v1974, %v2062
      %2064 = vmatmul.bf16.gmra.mxu0 %v1040
      %v2065 = vpop.f32.mrf.mxu0
      %v2066 = vadd.f32 %v1977, %v2065
      %v2067 = vpop.f32.mrf.mxu0
      %v2068 = vadd.f32 %v1979, %v2067
      %2069 = vdwg.mxu0
      %2070 = vmatpush.bf16.msra.mxu0 %v1528
      %2071 = vmatpush.bf16.msra.mxu0 %v1527
      %2072 = vmatpush.bf16.msra.mxu0 %v1526
      %2073 = vmatpush.bf16.msra.mxu0 %v1525
      %2074 = vmatpush.bf16.msra.mxu0 %v1524
      %2075 = vmatpush.bf16.msra.mxu0 %v1523
      %2076 = vmatpush.bf16.msra.mxu0 %v1522
      %2077 = vmatpush.bf16.msra.mxu0 %v1521
      %2078 = vmatmul.bf16.gmra.mxu0 %v996
      %v2079 = vpop.f32.mrf.mxu0
      %v2080 = vadd.f32 %v1991, %v2079
      %v2081 = vpop.f32.mrf.mxu0
      %v2082 = vadd.f32 %v1993, %v2081
      %2083 = vmatmul.bf16.gmra.mxu0 %v999
      %v2084 = vpop.f32.mrf.mxu0
      %v2085 = vadd.f32 %v1996, %v2084
      %v2086 = vpop.f32.mrf.mxu0
      %v2087 = vadd.f32 %v1998, %v2086
      %2088 = vmatmul.bf16.gmra.mxu0 %v1002
      %v2089 = vpop.f32.mrf.mxu0
      %v2090 = vadd.f32 %v2001, %v2089
      %v2091 = vpop.f32.mrf.mxu0
      %v2092 = vadd.f32 %v2003, %v2091
      %2093 = vmatmul.bf16.gmra.mxu0 %v1005
      %v2094 = vpop.f32.mrf.mxu0
      %v2095 = vadd.f32 %v2006, %v2094
      %v2096 = vpop.f32.mrf.mxu0
      %v2097 = vadd.f32 %v2008, %v2096
      %2098 = vmatmul.bf16.gmra.mxu0 %v1008
      %v2099 = vpop.f32.mrf.mxu0
      %v2100 = vadd.f32 %v2011, %v2099
      %v2101 = vpop.f32.mrf.mxu0
      %v2102 = vadd.f32 %v2013, %v2101
      %2103 = vmatmul.bf16.gmra.mxu0 %v1011
      %v2104 = vpop.f32.mrf.mxu0
      %v2105 = vadd.f32 %v2016, %v2104
      %v2106 = vpop.f32.mrf.mxu0
      %v2107 = vadd.f32 %v2018, %v2106
      %2108 = vmatmul.bf16.gmra.mxu0 %v1014
      %v2109 = vpop.f32.mrf.mxu0
      %v2110 = vadd.f32 %v2021, %v2109
      %v2111 = vpop.f32.mrf.mxu0
      %v2112 = vadd.f32 %v2023, %v2111
      %2113 = vmatmul.bf16.gmra.mxu0 %v1017
      %v2114 = vpop.f32.mrf.mxu0
      %v2115 = vadd.f32 %v2026, %v2114
      %v2116 = vpop.f32.mrf.mxu0
      %v2117 = vadd.f32 %v2028, %v2116
      %2118 = vmatmul.bf16.gmra.mxu0 %v1020
      %v2119 = vpop.f32.mrf.mxu0
      %v2120 = vadd.f32 %v2031, %v2119
      %v2121 = vpop.f32.mrf.mxu0
      %v2122 = vadd.f32 %v2033, %v2121
      %2123 = vmatmul.bf16.gmra.mxu0 %v1023
      %v2124 = vpop.f32.mrf.mxu0
      %v2125 = vadd.f32 %v2036, %v2124
      %v2126 = vpop.f32.mrf.mxu0
      %v2127 = vadd.f32 %v2038, %v2126
      %2128 = vmatmul.bf16.gmra.mxu0 %v1026
      %v2129 = vpop.f32.mrf.mxu0
      %v2130 = vadd.f32 %v2041, %v2129
      %v2131 = vpop.f32.mrf.mxu0
      %v2132 = vadd.f32 %v2043, %v2131
      %2133 = vmatmul.bf16.gmra.mxu0 %v1029
      %v2134 = vpop.f32.mrf.mxu0
      %v2135 = vadd.f32 %v2046, %v2134
      %v2136 = vpop.f32.mrf.mxu0
      %v2137 = vadd.f32 %v2048, %v2136
      %2138 = vmatmul.bf16.gmra.mxu0 %v1032
      %v2139 = vpop.f32.mrf.mxu0
      %v2140 = vadd.f32 %v2051, %v2139
      %v2141 = vpop.f32.mrf.mxu0
      %v2142 = vadd.f32 %v2053, %v2141
      %2143 = vmatmul.bf16.gmra.mxu0 %v1035
      %v2144 = vpop.f32.mrf.mxu0
      %v2145 = vadd.f32 %v2056, %v2144
      %v2146 = vpop.f32.mrf.mxu0
      %v2147 = vadd.f32 %v2058, %v2146
      %2148 = vmatmul.bf16.gmra.mxu0 %v1038
      %v2149 = vpop.f32.mrf.mxu0
      %v2150 = vadd.f32 %v2061, %v2149
      %v2151 = vpop.f32.mrf.mxu0
      %v2152 = vadd.f32 %v2063, %v2151
      %2153 = vmatmul.bf16.gmra.mxu0 %v1041
      %v2154 = vpop.f32.mrf.mxu0
      %v2155 = vadd.f32 %v2066, %v2154
      %v2156 = vpop.f32.mrf.mxu0
      %v2157 = vadd.f32 %v2068, %v2156
      %2158 = vdwg.mxu0
      %2159 = vmatpush.bf16.msra.mxu0 %v1536
      %2160 = vmatpush.bf16.msra.mxu0 %v1535
      %2161 = vmatpush.bf16.msra.mxu0 %v1534
      %2162 = vmatpush.bf16.msra.mxu0 %v1533
      %2163 = vmatpush.bf16.msra.mxu0 %v1532
      %2164 = vmatpush.bf16.msra.mxu0 %v1531
      %2165 = vmatpush.bf16.msra.mxu0 %v1530
      %2166 = vmatpush.bf16.msra.mxu0 %v1529
      %2167 = vmatmul.bf16.gmra.mxu0 %v997
      %v2168 = vpop.f32.mrf.mxu0
      %v2169 = vadd.f32 %v2080, %v2168
      %v2170 = vpop.f32.mrf.mxu0
      %v2171 = vadd.f32 %v2082, %v2170
      %2172 = vmatmul.bf16.gmra.mxu0 %v1000
      %v2173 = vpop.f32.mrf.mxu0
      %v2174 = vadd.f32 %v2085, %v2173
      %v2175 = vpop.f32.mrf.mxu0
      %v2176 = vadd.f32 %v2087, %v2175
      %2177 = vmatmul.bf16.gmra.mxu0 %v1003
      %v2178 = vpop.f32.mrf.mxu0
      %v2179 = vadd.f32 %v2090, %v2178
      %v2180 = vpop.f32.mrf.mxu0
      %v2181 = vadd.f32 %v2092, %v2180
      %2182 = vmatmul.bf16.gmra.mxu0 %v1006
      %v2183 = vpop.f32.mrf.mxu0
      %v2184 = vadd.f32 %v2095, %v2183
      %v2185 = vpop.f32.mrf.mxu0
      %v2186 = vadd.f32 %v2097, %v2185
      %2187 = vmatmul.bf16.gmra.mxu0 %v1009
      %v2188 = vpop.f32.mrf.mxu0
      %v2189 = vadd.f32 %v2100, %v2188
      %v2190 = vpop.f32.mrf.mxu0
      %v2191 = vadd.f32 %v2102, %v2190
      %2192 = vmatmul.bf16.gmra.mxu0 %v1012
      %v2193 = vpop.f32.mrf.mxu0
      %v2194 = vadd.f32 %v2105, %v2193
      %v2195 = vpop.f32.mrf.mxu0
      %v2196 = vadd.f32 %v2107, %v2195
      %2197 = vmatmul.bf16.gmra.mxu0 %v1015
      %v2198 = vpop.f32.mrf.mxu0
      %v2199 = vadd.f32 %v2110, %v2198
      %v2200 = vpop.f32.mrf.mxu0
      %v2201 = vadd.f32 %v2112, %v2200
      %2202 = vmatmul.bf16.gmra.mxu0 %v1018
      %v2203 = vpop.f32.mrf.mxu0
      %v2204 = vadd.f32 %v2115, %v2203
      %v2205 = vpop.f32.mrf.mxu0
      %v2206 = vadd.f32 %v2117, %v2205
      %2207 = vmatmul.bf16.gmra.mxu0 %v1021
      %v2208 = vpop.f32.mrf.mxu0
      %v2209 = vadd.f32 %v2120, %v2208
      %v2210 = vpop.f32.mrf.mxu0
      %v2211 = vadd.f32 %v2122, %v2210
      %2212 = vmatmul.bf16.gmra.mxu0 %v1024
      %v2213 = vpop.f32.mrf.mxu0
      %v2214 = vadd.f32 %v2125, %v2213
      %v2215 = vpop.f32.mrf.mxu0
      %v2216 = vadd.f32 %v2127, %v2215
      %2217 = vmatmul.bf16.gmra.mxu0 %v1027
      %v2218 = vpop.f32.mrf.mxu0
      %v2219 = vadd.f32 %v2130, %v2218
      %v2220 = vpop.f32.mrf.mxu0
      %v2221 = vadd.f32 %v2132, %v2220
      %2222 = vmatmul.bf16.gmra.mxu0 %v1030
      %v2223 = vpop.f32.mrf.mxu0
      %v2224 = vadd.f32 %v2135, %v2223
      %v2225 = vpop.f32.mrf.mxu0
      %v2226 = vadd.f32 %v2137, %v2225
      %2227 = vmatmul.bf16.gmra.mxu0 %v1033
      %v2228 = vpop.f32.mrf.mxu0
      %v2229 = vadd.f32 %v2140, %v2228
      %v2230 = vpop.f32.mrf.mxu0
      %v2231 = vadd.f32 %v2142, %v2230
      %2232 = vmatmul.bf16.gmra.mxu0 %v1036
      %v2233 = vpop.f32.mrf.mxu0
      %v2234 = vadd.f32 %v2145, %v2233
      %v2235 = vpop.f32.mrf.mxu0
      %v2236 = vadd.f32 %v2147, %v2235
      %2237 = vmatmul.bf16.gmra.mxu0 %v1039
      %v2238 = vpop.f32.mrf.mxu0
      %v2239 = vadd.f32 %v2150, %v2238
      %v2240 = vpop.f32.mrf.mxu0
      %v2241 = vadd.f32 %v2152, %v2240
      %2242 = vmatmul.bf16.gmra.mxu0 %v1042
      %v2243 = vpop.f32.mrf.mxu0
      %v2244 = vadd.f32 %v2155, %v2243
      %v2245 = vpop.f32.mrf.mxu0
      %v2246 = vadd.f32 %v2157, %v2245
      %2247 = vdwg.mxu0
      %2248 = vmatpush.bf16.msra.mxu0 %v1544
      %2249 = vmatpush.bf16.msra.mxu0 %v1543
      %2250 = vmatpush.bf16.msra.mxu0 %v1542
      %2251 = vmatpush.bf16.msra.mxu0 %v1541
      %2252 = vmatpush.bf16.msra.mxu0 %v1540
      %2253 = vmatpush.bf16.msra.mxu0 %v1539
      %2254 = vmatpush.bf16.msra.mxu0 %v1538
      %2255 = vmatpush.bf16.msra.mxu0 %v1537
      %2256 = vmatmul.bf16.gmra.mxu0 %v998
      %v2257 = vpop.f32.mrf.mxu0
      %v2258 = vadd.f32 %v2169, %v2257
      %v2259 = vpop.f32.mrf.mxu0
      %v2260 = vadd.f32 %v2171, %v2259
      %2261 = vmatmul.bf16.gmra.mxu0 %v1001
      %v2262 = vpop.f32.mrf.mxu0
      %v2263 = vadd.f32 %v2174, %v2262
      %v2264 = vpop.f32.mrf.mxu0
      %v2265 = vadd.f32 %v2176, %v2264
      %2266 = vmatmul.bf16.gmra.mxu0 %v1004
      %v2267 = vpop.f32.mrf.mxu0
      %v2268 = vadd.f32 %v2179, %v2267
      %v2269 = vpop.f32.mrf.mxu0
      %v2270 = vadd.f32 %v2181, %v2269
      %2271 = vmatmul.bf16.gmra.mxu0 %v1007
      %v2272 = vpop.f32.mrf.mxu0
      %v2273 = vadd.f32 %v2184, %v2272
      %v2274 = vpop.f32.mrf.mxu0
      %v2275 = vadd.f32 %v2186, %v2274
      %2276 = vmatmul.bf16.gmra.mxu0 %v1010
      %v2277 = vpop.f32.mrf.mxu0
      %v2278 = vadd.f32 %v2189, %v2277
      %v2279 = vpop.f32.mrf.mxu0
      %v2280 = vadd.f32 %v2191, %v2279
      %2281 = vmatmul.bf16.gmra.mxu0 %v1013
      %v2282 = vpop.f32.mrf.mxu0
      %v2283 = vadd.f32 %v2194, %v2282
      %v2284 = vpop.f32.mrf.mxu0
      %v2285 = vadd.f32 %v2196, %v2284
      %2286 = vmatmul.bf16.gmra.mxu0 %v1016
      %v2287 = vpop.f32.mrf.mxu0
      %v2288 = vadd.f32 %v2199, %v2287
      %v2289 = vpop.f32.mrf.mxu0
      %v2290 = vadd.f32 %v2201, %v2289
      %2291 = vmatmul.bf16.gmra.mxu0 %v1019
      %v2292 = vpop.f32.mrf.mxu0
      %v2293 = vadd.f32 %v2204, %v2292
      %v2294 = vpop.f32.mrf.mxu0
      %v2295 = vadd.f32 %v2206, %v2294
      %2296 = vmatmul.bf16.gmra.mxu0 %v1022
      %v2297 = vpop.f32.mrf.mxu0
      %v2298 = vadd.f32 %v2209, %v2297
      %v2299 = vpop.f32.mrf.mxu0
      %v2300 = vadd.f32 %v2211, %v2299
      %2301 = vmatmul.bf16.gmra.mxu0 %v1025
      %v2302 = vpop.f32.mrf.mxu0
      %v2303 = vadd.f32 %v2214, %v2302
      %v2304 = vpop.f32.mrf.mxu0
      %v2305 = vadd.f32 %v2216, %v2304
      %2306 = vmatmul.bf16.gmra.mxu0 %v1028
      %v2307 = vpop.f32.mrf.mxu0
      %v2308 = vadd.f32 %v2219, %v2307
      %v2309 = vpop.f32.mrf.mxu0
      %v2310 = vadd.f32 %v2221, %v2309
      %2311 = vmatmul.bf16.gmra.mxu0 %v1031
      %v2312 = vpop.f32.mrf.mxu0
      %v2313 = vadd.f32 %v2224, %v2312
      %v2314 = vpop.f32.mrf.mxu0
      %v2315 = vadd.f32 %v2226, %v2314
      %2316 = vmatmul.bf16.gmra.mxu0 %v1034
      %v2317 = vpop.f32.mrf.mxu0
      %v2318 = vadd.f32 %v2229, %v2317
      %v2319 = vpop.f32.mrf.mxu0
      %v2320 = vadd.f32 %v2231, %v2319
      %2321 = vmatmul.bf16.gmra.mxu0 %v1037
      %v2322 = vpop.f32.mrf.mxu0
      %v2323 = vadd.f32 %v2234, %v2322
      %v2324 = vpop.f32.mrf.mxu0
      %v2325 = vadd.f32 %v2236, %v2324
      %2326 = vmatmul.bf16.gmra.mxu0 %v1040
      %v2327 = vpop.f32.mrf.mxu0
      %v2328 = vadd.f32 %v2239, %v2327
      %v2329 = vpop.f32.mrf.mxu0
      %v2330 = vadd.f32 %v2241, %v2329
      %2331 = vmatmul.bf16.gmra.mxu0 %v1043
      %v2332 = vpop.f32.mrf.mxu0
      %v2333 = vadd.f32 %v2244, %v2332
      %v2334 = vpop.f32.mrf.mxu0
      %v2335 = vadd.f32 %v2246, %v2334
      %2336 = vdwg.mxu0
      %2337 = vmatpush.bf16.msra.mxu0 %v1552
      %2338 = vmatpush.bf16.msra.mxu0 %v1551
      %2339 = vmatpush.bf16.msra.mxu0 %v1550
      %2340 = vmatpush.bf16.msra.mxu0 %v1549
      %2341 = vmatpush.bf16.msra.mxu0 %v1548
      %2342 = vmatpush.bf16.msra.mxu0 %v1547
      %2343 = vmatpush.bf16.msra.mxu0 %v1546
      %2344 = vmatpush.bf16.msra.mxu0 %v1545
      %2345 = vmatmul.bf16.gmra.mxu0 %v999
      %v2346 = vpop.f32.mrf.mxu0
      %v2347 = vadd.f32 %v2258, %v2346
      %v2348 = vpop.f32.mrf.mxu0
      %v2349 = vadd.f32 %v2260, %v2348
      %2350 = vmatmul.bf16.gmra.mxu0 %v1002
      %v2351 = vpop.f32.mrf.mxu0
      %v2352 = vadd.f32 %v2263, %v2351
      %v2353 = vpop.f32.mrf.mxu0
      %v2354 = vadd.f32 %v2265, %v2353
      %2355 = vmatmul.bf16.gmra.mxu0 %v1005
      %v2356 = vpop.f32.mrf.mxu0
      %v2357 = vadd.f32 %v2268, %v2356
      %v2358 = vpop.f32.mrf.mxu0
      %v2359 = vadd.f32 %v2270, %v2358
      %2360 = vmatmul.bf16.gmra.mxu0 %v1008
      %v2361 = vpop.f32.mrf.mxu0
      %v2362 = vadd.f32 %v2273, %v2361
      %v2363 = vpop.f32.mrf.mxu0
      %v2364 = vadd.f32 %v2275, %v2363
      %2365 = vmatmul.bf16.gmra.mxu0 %v1011
      %v2366 = vpop.f32.mrf.mxu0
      %v2367 = vadd.f32 %v2278, %v2366
      %v2368 = vpop.f32.mrf.mxu0
      %v2369 = vadd.f32 %v2280, %v2368
      %2370 = vmatmul.bf16.gmra.mxu0 %v1014
      %v2371 = vpop.f32.mrf.mxu0
      %v2372 = vadd.f32 %v2283, %v2371
      %v2373 = vpop.f32.mrf.mxu0
      %v2374 = vadd.f32 %v2285, %v2373
      %2375 = vmatmul.bf16.gmra.mxu0 %v1017
      %v2376 = vpop.f32.mrf.mxu0
      %v2377 = vadd.f32 %v2288, %v2376
      %v2378 = vpop.f32.mrf.mxu0
      %v2379 = vadd.f32 %v2290, %v2378
      %2380 = vmatmul.bf16.gmra.mxu0 %v1020
      %v2381 = vpop.f32.mrf.mxu0
      %v2382 = vadd.f32 %v2293, %v2381
      %v2383 = vpop.f32.mrf.mxu0
      %v2384 = vadd.f32 %v2295, %v2383
      %2385 = vmatmul.bf16.gmra.mxu0 %v1023
      %v2386 = vpop.f32.mrf.mxu0
      %v2387 = vadd.f32 %v2298, %v2386
      %v2388 = vpop.f32.mrf.mxu0
      %v2389 = vadd.f32 %v2300, %v2388
      %2390 = vmatmul.bf16.gmra.mxu0 %v1026
      %v2391 = vpop.f32.mrf.mxu0
      %v2392 = vadd.f32 %v2303, %v2391
      %v2393 = vpop.f32.mrf.mxu0
      %v2394 = vadd.f32 %v2305, %v2393
      %2395 = vmatmul.bf16.gmra.mxu0 %v1029
      %v2396 = vpop.f32.mrf.mxu0
      %v2397 = vadd.f32 %v2308, %v2396
      %v2398 = vpop.f32.mrf.mxu0
      %v2399 = vadd.f32 %v2310, %v2398
      %2400 = vmatmul.bf16.gmra.mxu0 %v1032
      %v2401 = vpop.f32.mrf.mxu0
      %v2402 = vadd.f32 %v2313, %v2401
      %v2403 = vpop.f32.mrf.mxu0
      %v2404 = vadd.f32 %v2315, %v2403
      %2405 = vmatmul.bf16.gmra.mxu0 %v1035
      %v2406 = vpop.f32.mrf.mxu0
      %v2407 = vadd.f32 %v2318, %v2406
      %v2408 = vpop.f32.mrf.mxu0
      %v2409 = vadd.f32 %v2320, %v2408
      %2410 = vmatmul.bf16.gmra.mxu0 %v1038
      %v2411 = vpop.f32.mrf.mxu0
      %v2412 = vadd.f32 %v2323, %v2411
      %v2413 = vpop.f32.mrf.mxu0
      %v2414 = vadd.f32 %v2325, %v2413
      %2415 = vmatmul.bf16.gmra.mxu0 %v1041
      %v2416 = vpop.f32.mrf.mxu0
      %v2417 = vadd.f32 %v2328, %v2416
      %v2418 = vpop.f32.mrf.mxu0
      %v2419 = vadd.f32 %v2330, %v2418
      %2420 = vmatmul.bf16.gmra.mxu0 %v1044
      %v2421 = vpop.f32.mrf.mxu0
      %v2422 = vadd.f32 %v2333, %v2421
      %v2423 = vpop.f32.mrf.mxu0
      %v2424 = vadd.f32 %v2335, %v2423
      %2425 = vdwg.mxu0
      %v2426 = vmax.f32 %v2347, 0.0
      %v2427 = vmax.f32 %v2349, 0.0
      %v2428 = vmax.f32 %v2352, 0.0
      %v2429 = vmax.f32 %v2354, 0.0
      %v2430 = vmax.f32 %v2357, 0.0
      %v2431 = vmax.f32 %v2359, 0.0
      %v2432 = vmax.f32 %v2362, 0.0
      %v2433 = vmax.f32 %v2364, 0.0
      %v2434 = vmax.f32 %v2367, 0.0
      %v2435 = vmax.f32 %v2369, 0.0
      %v2436 = vmax.f32 %v2372, 0.0
      %v2437 = vmax.f32 %v2374, 0.0
      %v2438 = vmax.f32 %v2377, 0.0
      %v2439 = vmax.f32 %v2379, 0.0
      %v2440 = vmax.f32 %v2382, 0.0
      %v2441 = vmax.f32 %v2384, 0.0
      %v2442 = vmax.f32 %v2387, 0.0
      %v2443 = vmax.f32 %v2389, 0.0
      %v2444 = vmax.f32 %v2392, 0.0
      %v2445 = vmax.f32 %v2394, 0.0
      %v2446 = vmax.f32 %v2397, 0.0
      %v2447 = vmax.f32 %v2399, 0.0
      %v2448 = vmax.f32 %v2402, 0.0
      %v2449 = vmax.f32 %v2404, 0.0
      %v2450 = vmax.f32 %v2407, 0.0
      %v2451 = vmax.f32 %v2409, 0.0
      %v2452 = vmax.f32 %v2412, 0.0
      %v2453 = vmax.f32 %v2414, 0.0
      %v2454 = vmax.f32 %v2417, 0.0
      %v2455 = vmax.f32 %v2419, 0.0
      %v2456 = vmax.f32 %v2422, 0.0
      %v2457 = vmax.f32 %v2424, 0.0
      %v2458 = vpack.c.bf16 %v2427, %v2426
      %v2459 = vpack.c.bf16 %v2429, %v2428
      %v2460 = vpack.c.bf16 %v2431, %v2430
      %v2461 = vpack.c.bf16 %v2433, %v2432
      %v2462 = vpack.c.bf16 %v2435, %v2434
      %v2463 = vpack.c.bf16 %v2437, %v2436
      %v2464 = vpack.c.bf16 %v2439, %v2438
      %v2465 = vpack.c.bf16 %v2441, %v2440
      %v2466 = vpack.c.bf16 %v2443, %v2442
      %v2467 = vpack.c.bf16 %v2445, %v2444
      %v2468 = vpack.c.bf16 %v2447, %v2446
      %v2469 = vpack.c.bf16 %v2449, %v2448
      %v2470 = vpack.c.bf16 %v2451, %v2450
      %v2471 = vpack.c.bf16 %v2453, %v2452
      %v2472 = vpack.c.bf16 %v2455, %v2454
      %v2473 = vpack.c.bf16 %v2457, %v2456
      %v2474 = vld [vmem:[%s5] sm:$0xf]
      %v2475 = vld [vmem:[%s5 + $0x4] sm:$0xf]
      %v2476 = vld [vmem:[%s5 + $0x8] sm:$0xf]
      %v2477 = vld [vmem:[%s5 + $0xc] sm:$0xf]
      %v2478 = vld [vmem:[%s5 + $0x10] sm:$0xf]
      %v2479 = vld [vmem:[%s5 + $0x14] sm:$0xf]
      %v2480 = vld [vmem:[%s5 + $0x18] sm:$0xf]
      %v2481 = vld [vmem:[%s5 + $0x1c] sm:$0xf]
      %v2482 = vld [vmem:[%s5 + $0x20] sm:$0xf]
      %v2483 = vld [vmem:[%s5 + $0x24] sm:$0xf]
      %v2484 = vld [vmem:[%s5 + $0x28] sm:$0xf]
      %v2485 = vld [vmem:[%s5 + $0x2c] sm:$0xf]
      %v2486 = vld [vmem:[%s5 + $0x30] sm:$0xf]
      %v2487 = vld [vmem:[%s5 + $0x34] sm:$0xf]
      %v2488 = vld [vmem:[%s5 + $0x38] sm:$0xf]
      %v2489 = vld [vmem:[%s5 + $0x3c] sm:$0xf]
      %v2490 = vld [vmem:[%s6] sm:$0x1]
      %v2492 = vperm.slane %v2490, 0
      %v2510 = vunpack.c.l.b16 %v2474
      %v2511 = vunpack.c.l.b16 %v2475
      %v2512 = vunpack.c.l.b16 %v2476
      %v2513 = vunpack.c.l.b16 %v2477
      %v2514 = vunpack.c.l.b16 %v2478
      %v2515 = vunpack.c.l.b16 %v2479
      %v2516 = vunpack.c.l.b16 %v2480
      %v2517 = vunpack.c.l.b16 %v2481
      %v2518 = vunpack.c.l.b16 %v2482
      %v2519 = vunpack.c.l.b16 %v2483
      %v2520 = vunpack.c.l.b16 %v2484
      %v2521 = vunpack.c.l.b16 %v2485
      %v2522 = vunpack.c.l.b16 %v2486
      %v2523 = vunpack.c.l.b16 %v2487
      %v2524 = vunpack.c.l.b16 %v2488
      %v2525 = vunpack.c.l.b16 %v2489
      %v2526 = vpack.c.b16 %v2511, %v2510
      %v2527 = vpack.c.b16 %v2513, %v2512
      %v2528 = vpack.c.b16 %v2515, %v2514
      %v2529 = vpack.c.b16 %v2517, %v2516
      %v2530 = vpack.c.b16 %v2519, %v2518
      %v2531 = vpack.c.b16 %v2521, %v2520
      %v2532 = vpack.c.b16 %v2523, %v2522
      %v2533 = vpack.c.b16 %v2525, %v2524
      %2542 = vmatpush.bf16.msra.mxu0 %v2533
      %2543 = vmatpush.bf16.msra.mxu0 %v2532
      %2544 = vmatpush.bf16.msra.mxu0 %v2531
      %2545 = vmatpush.bf16.msra.mxu0 %v2530
      %2546 = vmatpush.bf16.msra.mxu0 %v2529
      %2547 = vmatpush.bf16.msra.mxu0 %v2528
      %2548 = vmatpush.bf16.msra.mxu0 %v2527
      %2549 = vmatpush.bf16.msra.mxu0 %v2526
      %2550 = vmatmul.bf16.gmra.mxu0 %v2458
      %v2551 = vpop.f32.mrf.mxu0
      %v2552 = vadd.f32 %v2492, %v2551
      %v2553 = vpop.f32.mrf.mxu0
      %v2554 = vadd.f32 %v2492, %v2553
      %2555 = vmatmul.bf16.gmra.mxu0 %v2459
      %v2556 = vpop.f32.mrf.mxu0
      %v2557 = vadd.f32 %v2492, %v2556
      %v2558 = vpop.f32.mrf.mxu0
      %v2559 = vadd.f32 %v2492, %v2558
      %2560 = vmatmul.bf16.gmra.mxu0 %v2460
      %v2561 = vpop.f32.mrf.mxu0
      %v2562 = vadd.f32 %v2492, %v2561
      %v2563 = vpop.f32.mrf.mxu0
      %v2564 = vadd.f32 %v2492, %v2563
      %2565 = vmatmul.bf16.gmra.mxu0 %v2461
      %v2566 = vpop.f32.mrf.mxu0
      %v2567 = vadd.f32 %v2492, %v2566
      %v2568 = vpop.f32.mrf.mxu0
      %v2569 = vadd.f32 %v2492, %v2568
      %2570 = vmatmul.bf16.gmra.mxu0 %v2462
      %v2571 = vpop.f32.mrf.mxu0
      %v2572 = vadd.f32 %v2492, %v2571
      %v2573 = vpop.f32.mrf.mxu0
      %v2574 = vadd.f32 %v2492, %v2573
      %2575 = vmatmul.bf16.gmra.mxu0 %v2463
      %v2576 = vpop.f32.mrf.mxu0
      %v2577 = vadd.f32 %v2492, %v2576
      %v2578 = vpop.f32.mrf.mxu0
      %v2579 = vadd.f32 %v2492, %v2578
      %2580 = vmatmul.bf16.gmra.mxu0 %v2464
      %v2581 = vpop.f32.mrf.mxu0
      %v2582 = vadd.f32 %v2492, %v2581
      %v2583 = vpop.f32.mrf.mxu0
      %v2584 = vadd.f32 %v2492, %v2583
      %2585 = vmatmul.bf16.gmra.mxu0 %v2465
      %v2586 = vpop.f32.mrf.mxu0
      %v2587 = vadd.f32 %v2492, %v2586
      %v2588 = vpop.f32.mrf.mxu0
      %v2589 = vadd.f32 %v2492, %v2588
      %2590 = vmatmul.bf16.gmra.mxu0 %v2466
      %v2591 = vpop.f32.mrf.mxu0
      %v2592 = vadd.f32 %v2492, %v2591
      %v2593 = vpop.f32.mrf.mxu0
      %v2594 = vadd.f32 %v2492, %v2593
      %2595 = vmatmul.bf16.gmra.mxu0 %v2467
      %v2596 = vpop.f32.mrf.mxu0
      %v2597 = vadd.f32 %v2492, %v2596
      %v2598 = vpop.f32.mrf.mxu0
      %v2599 = vadd.f32 %v2492, %v2598
      %2600 = vmatmul.bf16.gmra.mxu0 %v2468
      %v2601 = vpop.f32.mrf.mxu0
      %v2602 = vadd.f32 %v2492, %v2601
      %v2603 = vpop.f32.mrf.mxu0
      %v2604 = vadd.f32 %v2492, %v2603
      %2605 = vmatmul.bf16.gmra.mxu0 %v2469
      %v2606 = vpop.f32.mrf.mxu0
      %v2607 = vadd.f32 %v2492, %v2606
      %v2608 = vpop.f32.mrf.mxu0
      %v2609 = vadd.f32 %v2492, %v2608
      %2610 = vmatmul.bf16.gmra.mxu0 %v2470
      %v2611 = vpop.f32.mrf.mxu0
      %v2612 = vadd.f32 %v2492, %v2611
      %v2613 = vpop.f32.mrf.mxu0
      %v2614 = vadd.f32 %v2492, %v2613
      %2615 = vmatmul.bf16.gmra.mxu0 %v2471
      %v2616 = vpop.f32.mrf.mxu0
      %v2617 = vadd.f32 %v2492, %v2616
      %v2618 = vpop.f32.mrf.mxu0
      %v2619 = vadd.f32 %v2492, %v2618
      %2620 = vmatmul.bf16.gmra.mxu0 %v2472
      %v2621 = vpop.f32.mrf.mxu0
      %v2622 = vadd.f32 %v2492, %v2621
      %v2623 = vpop.f32.mrf.mxu0
      %v2624 = vadd.f32 %v2492, %v2623
      %2625 = vmatmul.bf16.gmra.mxu0 %v2473
      %v2626 = vpop.f32.mrf.mxu0
      %v2627 = vadd.f32 %v2492, %v2626
      %v2628 = vpop.f32.mrf.mxu0
      %v2629 = vadd.f32 %v2492, %v2628
      %2630 = vdwg.mxu0
      %v2631 = vadd.f32 %v2552, %v312
      %v2632 = vadd.f32 %v2554, %v313
      %v2633 = vadd.f32 %v2557, %v314
      %v2634 = vadd.f32 %v2559, %v315
      %v2635 = vadd.f32 %v2562, %v316
      %v2636 = vadd.f32 %v2564, %v317
      %v2637 = vadd.f32 %v2567, %v318
      %v2638 = vadd.f32 %v2569, %v319
      %v2639 = vadd.f32 %v2572, %v320
      %v2640 = vadd.f32 %v2574, %v321
      %v2641 = vadd.f32 %v2577, %v322
      %v2642 = vadd.f32 %v2579, %v323
      %v2643 = vadd.f32 %v2582, %v324
      %v2644 = vadd.f32 %v2584, %v325
      %v2645 = vadd.f32 %v2587, %v326
      %v2646 = vadd.f32 %v2589, %v327
      %v2647 = vadd.f32 %v2592, %v328
      %v2648 = vadd.f32 %v2594, %v329
      %v2649 = vadd.f32 %v2597, %v330
      %v2650 = vadd.f32 %v2599, %v331
      %v2651 = vadd.f32 %v2602, %v332
      %v2652 = vadd.f32 %v2604, %v333
      %v2653 = vadd.f32 %v2607, %v334
      %v2654 = vadd.f32 %v2609, %v335
      %v2655 = vadd.f32 %v2612, %v336
      %v2656 = vadd.f32 %v2614, %v337
      %v2657 = vadd.f32 %v2617, %v338
      %v2658 = vadd.f32 %v2619, %v339
      %v2659 = vadd.f32 %v2622, %v340
      %v2660 = vadd.f32 %v2624, %v341
      %v2661 = vadd.f32 %v2627, %v342
      %v2662 = vadd.f32 %v2629, %v343
      %v2663 = vmax.f32 %v2631, 0.0
      %v2664 = vmax.f32 %v2632, 0.0
      %v2665 = vmax.f32 %v2633, 0.0
      %v2666 = vmax.f32 %v2634, 0.0
      %v2667 = vmax.f32 %v2635, 0.0
      %v2668 = vmax.f32 %v2636, 0.0
      %v2669 = vmax.f32 %v2637, 0.0
      %v2670 = vmax.f32 %v2638, 0.0
      %v2671 = vmax.f32 %v2639, 0.0
      %v2672 = vmax.f32 %v2640, 0.0
      %v2673 = vmax.f32 %v2641, 0.0
      %v2674 = vmax.f32 %v2642, 0.0
      %v2675 = vmax.f32 %v2643, 0.0
      %v2676 = vmax.f32 %v2644, 0.0
      %v2677 = vmax.f32 %v2645, 0.0
      %v2678 = vmax.f32 %v2646, 0.0
      %v2679 = vmax.f32 %v2647, 0.0
      %v2680 = vmax.f32 %v2648, 0.0
      %v2681 = vmax.f32 %v2649, 0.0
      %v2682 = vmax.f32 %v2650, 0.0
      %v2683 = vmax.f32 %v2651, 0.0
      %v2684 = vmax.f32 %v2652, 0.0
      %v2685 = vmax.f32 %v2653, 0.0
      %v2686 = vmax.f32 %v2654, 0.0
      %v2687 = vmax.f32 %v2655, 0.0
      %v2688 = vmax.f32 %v2656, 0.0
      %v2689 = vmax.f32 %v2657, 0.0
      %v2690 = vmax.f32 %v2658, 0.0
      %v2691 = vmax.f32 %v2659, 0.0
      %v2692 = vmax.f32 %v2660, 0.0
      %v2693 = vmax.f32 %v2661, 0.0
      %v2694 = vmax.f32 %v2662, 0.0
      %2695 = vst.msk [vmem:[%s278] sm:$0xff] %vm372, %v2663
      %2696 = vst.msk [vmem:[%s278 + $0x8] sm:$0xff] %vm372, %v2664
      %2697 = vst.msk [vmem:[%s278 + $0x10] sm:$0xff] %vm372, %v2665
      %2698 = vst.msk [vmem:[%s278 + $0x18] sm:$0xff] %vm372, %v2666
      %2699 = vst.msk [vmem:[%s278 + $0x20] sm:$0xff] %vm372, %v2667
      %2700 = vst.msk [vmem:[%s278 + $0x28] sm:$0xff] %vm372, %v2668
      %2701 = vst.msk [vmem:[%s278 + $0x30] sm:$0xff] %vm372, %v2669
      %2702 = vst.msk [vmem:[%s278 + $0x38] sm:$0xff] %vm372, %v2670
      %2703 = vst.msk [vmem:[%s278 + $0x40] sm:$0xff] %vm372, %v2671
      %2704 = vst.msk [vmem:[%s278 + $0x48] sm:$0xff] %vm372, %v2672
      %2705 = vst.msk [vmem:[%s278 + $0x50] sm:$0xff] %vm372, %v2673
      %2706 = vst.msk [vmem:[%s278 + $0x58] sm:$0xff] %vm372, %v2674
      %2707 = vst.msk [vmem:[%s278 + $0x60] sm:$0xff] %vm372, %v2675
      %2708 = vst.msk [vmem:[%s278 + $0x68] sm:$0xff] %vm372, %v2676
      %2709 = vst.msk [vmem:[%s278 + $0x70] sm:$0xff] %vm372, %v2677
      %2710 = vst.msk [vmem:[%s278 + $0x78] sm:$0xff] %vm372, %v2678
      %2711 = vst.msk [vmem:[%s278 + $0x80] sm:$0xff] %vm372, %v2679
      %2712 = vst.msk [vmem:[%s278 + $0x88] sm:$0xff] %vm372, %v2680
      %2713 = vst.msk [vmem:[%s278 + $0x90] sm:$0xff] %vm372, %v2681
      %2714 = vst.msk [vmem:[%s278 + $0x98] sm:$0xff] %vm372, %v2682
      %2715 = vst.msk [vmem:[%s278 + $0xa0] sm:$0xff] %vm372, %v2683
      %2716 = vst.msk [vmem:[%s278 + $0xa8] sm:$0xff] %vm372, %v2684
      %2717 = vst.msk [vmem:[%s278 + $0xb0] sm:$0xff] %vm372, %v2685
      %2718 = vst.msk [vmem:[%s278 + $0xb8] sm:$0xff] %vm372, %v2686
      %2719 = vst.msk [vmem:[%s278 + $0xc0] sm:$0xff] %vm372, %v2687
      %2720 = vst.msk [vmem:[%s278 + $0xc8] sm:$0xff] %vm372, %v2688
      %2721 = vst.msk [vmem:[%s278 + $0xd0] sm:$0xff] %vm372, %v2689
      %2722 = vst.msk [vmem:[%s278 + $0xd8] sm:$0xff] %vm372, %v2690
      %2723 = vst.msk [vmem:[%s278 + $0xe0] sm:$0xff] %vm372, %v2691
      %2724 = vst.msk [vmem:[%s278 + $0xe8] sm:$0xff] %vm372, %v2692
      %2725 = vst.msk [vmem:[%s278 + $0xf0] sm:$0xff] %vm372, %v2693
      %2726 = vst.msk [vmem:[%s278 + $0xf8] sm:$0xff] %vm372, %v2694
      %p2727 = scmp.lt.s32.totalorder %s18, 1
      %s2728 = scalar_select %p2727, %s18, 1
      %s2729 = smul.addr %s2728, 32
      %s2730 = smul.addr %s2729, 8
      %s2731 = scalar_lea.vmem %s7, %s2730
      // Predicated region
      $region49: #{bottleneck_forward_nchw.1} parent=47 // pred_check
        %p2732 = pneg %p188
      $region50: #{bottleneck_forward_nchw.1} parent=47 // pred_check_branch
        %2734 = sbr.rel (%p2732) target = $region52
      $region51: #{bottleneck_forward_nchw.1} parent=47 // pred_region
        _
      $region52: #{bottleneck_forward_nchw.1} parent=47 // pred_fallthru
        _
    $region48: #{bottleneck_forward_nchw.1} parent=5 // pred_fallthru
      _
    %p2735 = scmp.le.s32.totalorder 2, %s13
    // Predicated region
    $region53: #{bottleneck_forward_nchw.1} parent=5 // pred_check
      %p2736 = pneg %p2735
    $region54: #{bottleneck_forward_nchw.1} parent=5 // pred_check_branch
      %2738 = sbr.rel (%p2736) target = $region56
    $region55: #{bottleneck_forward_nchw.1} parent=5 // pred_region
      %s2739 = ssub.s32 %s13, 2
      // Predicated region
      $region57: #{bottleneck_forward_nchw.1} parent=55 // pred_check
        %p2740 = pneg %p194
      $region58: #{bottleneck_forward_nchw.1} parent=55 // pred_check_branch
        %2742 = sbr.rel (%p2740) target = $region60
      $region59: #{bottleneck_forward_nchw.1} parent=55 // pred_region
        %p2743 = scmp.lt.s32.totalorder %s19, 1
        %s2744 = scalar_select %p2743, %s19, 1
        %s2745 = smul.addr %s2744, 32
        %s2746 = smul.addr %s2745, 8
        %s2747 = scalar_lea.vmem %s7, %s2746
      $region60: #{bottleneck_forward_nchw.1} parent=55 // pred_fallthru
        _
    $region56: #{bottleneck_forward_nchw.1} parent=5 // pred_fallthru
      _
  $region6: #{bottleneck_forward_nchw.1} parent=0 // loop_footer
    %s17 = sadd.s32 1, %s13
  $region7: #{bottleneck_forward_nchw.1} parent=0 // loop_footer_branch
    %12 = sbr.rel target = $region3
  $region8: #{bottleneck_forward_nchw.1} parent=0 // loop_exit
    _

</llo_original>
